<compile_context>
chip_gen: v5e
topology: v5e:2x2
jax: 0.10.0
libtpu: 0.0.40
codegen_flags: <defaults>
</compile_context>

<pallas_src>
import math

import jax
import jax.numpy as jnp
from jax.experimental import pallas as pl
from jax.experimental.pallas import tpu as pltpu


def make_lstm_kernel(num_layers, seq_len, hidden_dim, batch_block, output_dim,
                     compute_dtype):
    H = hidden_dim
    T = seq_len
    Bb = batch_block
    L = num_layers

    def kernel(*refs):
        # refs = [x,
        #         w_ih0T, w_hh0T, b0,                  (layer 0)
        #         (w_stackT, b)_l for l in 1..L-1,     (layers >= 1, stacked [W_ih; W_hh])
        #         fc_w, fc_b,
        #         out,
        #         gx_scr]
        idx = 0
        x_ref = refs[idx]; idx += 1
        w_ih0_ref = refs[idx]; idx += 1
        w_hh0_ref = refs[idx]; idx += 1
        b0_ref = refs[idx]; idx += 1
        stacked_refs = []
        for _ in range(1, L):
            stacked_refs.append((refs[idx], refs[idx + 1]))
            idx += 2
        fc_w_ref = refs[idx]; idx += 1
        fc_b_ref = refs[idx]; idx += 1
        out_ref = refs[idx]; idx += 1
        gx_scr = refs[idx]; idx += 1

        # ---- Hoisted layer-0 input projection for ALL timesteps: one MXU matmul,
        # staged in VMEM so it is not kept live across the unrolled wavefront.
        inp_seq = x_ref[0]                                   # (T*Bb, in_dim)
        gx_scr[...] = (
            jnp.dot(inp_seq, w_ih0_ref[...], preferred_element_type=jnp.float32)
            + b0_ref[...]
        )                                                    # (T*Bb, 4H) f32

        # Loop-invariant weight loads (hoisted out of the recurrence).
        w_hh0 = w_hh0_ref[...]                               # (H, 4H)
        stacked = [(w[...], b[...]) for (w, b) in stacked_refs]  # [(2H,4H), (1,4H)]

        # Gate columns were permuted at weight-prep time to [i | f | o | g]:
        # sigmoid covers [:, :3H], tanh covers [:, 3H:4H].
        def cell(gates, c):
            sig = jax.nn.sigmoid(gates[:, 0:3 * H])
            g_g = jnp.tanh(gates[:, 3 * H:4 * H])
            i_g = sig[:, 0:H]
            f_g = sig[:, H:2 * H]
            o_g = sig[:, 2 * H:3 * H]
            c_new = f_g * c + i_g * g_g
            h_new = o_g * jnp.tanh(c_new)
            return h_new, c_new

        h = [jnp.zeros((Bb, H), jnp.float32) for _ in range(L)]
        c = [jnp.zeros((Bb, H), jnp.float32) for _ in range(L)]

        # ---- Wavefront over (layer, time): wave step s -> layer l handles t = s - l.
        # Layers are visited high -> low so layer l reads layer l-1's timestep-t
        # output before layer l-1 overwrites it with timestep t+1.
        for s in range(T + L - 1):
            for l in reversed(range(L)):
                t = s - l
                if not (0 <= t < T):
                    continue
                if l == 0:
                    # Static, sublane-aligned slice of the staged projection +
                    # recurrent h @ W_hh (the only matmul on layer 0's serial path).
                    gates = gx_scr[t * Bb:(t + 1) * Bb, :] + jnp.dot(
                        h[0].astype(compute_dtype), w_hh0,
                        preferred_element_type=jnp.float32)
                else:
                    # Fused input + recurrent projection: [h_{l-1,t}, h_{l,t-1}] @ [W_ih; W_hh].
                    w_st, b_l = stacked[l - 1]
                    hh = jnp.concatenate([h[l - 1], h[l]], axis=1).astype(compute_dtype)
                    gates = jnp.dot(hh, w_st,
                                    preferred_element_type=jnp.float32) + b_l
                h[l], c[l] = cell(gates, c[l])

        h_last = h[L - 1]                                    # (Bb, H) f32, top layer, t = T-1

        # ---- FC epilogue on the last timestep's hidden state.
        if output_dim == 1:
            # VPU multiply + XLU row reduce: no N=1 MXU fill/drain round-trip.
            out_ref[0] = (jnp.sum(h_last * fc_w_ref[...], axis=-1, keepdims=True)
                          + fc_b_ref[...])
        else:
            out_ref[0] = (jnp.dot(h_last.astype(compute_dtype), fc_w_ref[...],
                                  preferred_element_type=jnp.float32)
                          + fc_b_ref[...])

    return kernel


def lstm_model_forward(x, params, *, hidden_dim, num_layers, output_dim,
                       compute_dtype=jnp.bfloat16, batch_block=8,
                       min_parallel_blocks=1):
    """Pallas forward for LSTMModel.

    compute_dtype: matmul operand dtype (f32 recommended on v5e, bf16 on v6e/v7x).
    batch_block:   rows per grid block; rounded up to a sublane multiple (8),
                   grow toward the MXU M height for real batches.
    min_parallel_blocks: set >=2 on v7x so both TensorCores receive a block.
    """
    B, T, in_dim = x.shape
    H = hidden_dim
    G = 4 * H

    # Sublane-aligned batch block; pad the batch with zero rows.
    B_BLK = ((max(8, batch_block) + 7) // 8) * 8
    nb = max(min_parallel_blocks, pl.cdiv(B, B_BLK))
    B_pad = nb * B_BLK

    xp = x
    if B_pad != B:
        xp = jnp.concatenate([x, jnp.zeros((B_pad - B, T, in_dim), x.dtype)], axis=0)

    # (nb, T*B_BLK, in_dim), time-major inside each block: row = t*B_BLK + b.
    x_tm = jnp.transpose(xp, (1, 0, 2)).astype(compute_dtype)       # (T, B_pad, in)
    x_tm = x_tm.reshape(T, nb, B_BLK, in_dim)
    x_tm = jnp.transpose(x_tm, (1, 0, 2, 3)).reshape(nb, T * B_BLK, in_dim)

    def permute_gate_cols(w):
        # torch gate order [i, f, g, o]  ->  kernel order [i, f, o, g]
        return jnp.concatenate(
            [w[..., 0:H], w[..., H:2 * H], w[..., 3 * H:4 * H], w[..., 2 * H:3 * H]],
            axis=-1)

    flat_inputs = [x_tm]
    in_specs = [pl.BlockSpec((1, T * B_BLK, in_dim), lambda i: (i, 0, 0))]

    # Layer 0: separate W_ih (projection hoisted over time) and W_hh.
    w_ih, w_hh, b_ih, b_hh = params["lstm"][0]
    flat_inputs += [
        permute_gate_cols(w_ih.T).astype(compute_dtype),                # (in, 4H)
        permute_gate_cols(w_hh.T).astype(compute_dtype),                # (H, 4H)
        permute_gate_cols((b_ih + b_hh)[None, :]).astype(jnp.float32),  # (1, 4H)
    ]
    in_specs += [
        pl.BlockSpec((in_dim, G), lambda i: (0, 0)),
        pl.BlockSpec((H, G), lambda i: (0, 0)),
        pl.BlockSpec((1, G), lambda i: (0, 0)),
    ]

    # Layers >= 1: stacked [W_ih; W_hh] for the fused per-step wavefront matmul.
    for l in range(1, num_layers):
        w_ih, w_hh, b_ih, b_hh = params["lstm"][l]
        w_stack = jnp.concatenate([w_ih.T, w_hh.T], axis=0)             # (2H, 4H)
        flat_inputs += [
            permute_gate_cols(w_stack).astype(compute_dtype),
            permute_gate_cols((b_ih + b_hh)[None, :]).astype(jnp.float32),
        ]
        in_specs += [
            pl.BlockSpec((2 * H, G), lambda i: (0, 0)),
            pl.BlockSpec((1, G), lambda i: (0, 0)),
        ]

    # FC weights: row layout for the VPU path (out_dim == 1), (H, out) otherwise.
    if output_dim == 1:
        fc_w_in = params["fc_w"].astype(jnp.float32)                    # (1, H)
        fc_w_spec = pl.BlockSpec((1, H), lambda i: (0, 0))
    else:
        fc_w_in = params["fc_w"].T.astype(compute_dtype)                # (H, out)
        fc_w_spec = pl.BlockSpec((H, output_dim), lambda i: (0, 0))
    flat_inputs += [fc_w_in, params["fc_b"][None, :].astype(jnp.float32)]
    in_specs += [fc_w_spec, pl.BlockSpec((1, output_dim), lambda i: (0, 0))]

    kernel = make_lstm_kernel(num_layers, T, H, B_BLK, output_dim, compute_dtype)

    out = pl.pallas_call(
        kernel,
        out_shape=jax.ShapeDtypeStruct((nb, B_BLK, output_dim), jnp.float32),
        grid=(nb,),
        in_specs=in_specs,
        out_specs=pl.BlockSpec((1, B_BLK, output_dim), lambda i: (i, 0, 0)),
        scratch_shapes=[
            # Layer-0 gate projection staging (bounds vreg pressure when Bb/T grow).
            pltpu.VMEM((T * B_BLK, G), jnp.float32),
        ],
        compiler_params=pltpu.CompilerParams(
            # Batch blocks are independent -> shard across TensorCores on v7x.
            dimension_semantics=("parallel",),
            # NOTE: for large H/T/Bb on v7x (64 MiB VMEM) set vmem_limit_bytes
            # and stream x over a T grid axis; unnecessary at these shapes.
        ),
    )(*flat_inputs)

    return out.reshape(B_pad, output_dim)[:B]


def lstm_model_ref(x, params, *, hidden_dim, num_layers):
    """Pure-JAX f32 reference matching torch.nn.LSTM(batch_first=True) + Linear."""
    B, T, _ = x.shape
    H = hidden_dim
    h = [jnp.zeros((B, H), jnp.float32) for _ in range(num_layers)]
    c = [jnp.zeros((B, H), jnp.float32) for _ in range(num_layers)]
    for t in range(T):
        inp = x[:, t, :]
        for l in range(num_layers):
            w_ih, w_hh, b_ih, b_hh = params["lstm"][l]
            gates = inp @ w_ih.T + b_ih + h[l] @ w_hh.T + b_hh
            i_g = jax.nn.sigmoid(gates[:, 0:H])
            f_g = jax.nn.sigmoid(gates[:, H:2 * H])
            g_g = jnp.tanh(gates[:, 2 * H:3 * H])
            o_g = jax.nn.sigmoid(gates[:, 3 * H:4 * H])
            c[l] = f_g * c[l] + i_g * g_g
            h[l] = o_g * jnp.tanh(c[l])
            inp = h[l]
    return h[-1] @ params["fc_w"].T + params["fc_b"]


def init_params(key, input_dim, hidden_dim, num_layers, output_dim):
    """Deterministic init mirroring PyTorch's U(-1/sqrt(H), 1/sqrt(H))."""
    k = 1.0 / math.sqrt(hidden_dim)
    params = {"lstm": []}
    for l in range(num_layers):
        in_l = input_dim if l == 0 else hidden_dim
        key, k1, k2, k3, k4 = jax.random.split(key, 5)
        w_ih = jax.random.uniform(k1, (4 * hidden_dim, in_l), jnp.float32, -k, k)
        w_hh = jax.random.uniform(k2, (4 * hidden_dim, hidden_dim), jnp.float32, -k, k)
        b_ih = jax.random.uniform(k3, (4 * hidden_dim,), jnp.float32, -k, k)
        b_hh = jax.random.uniform(k4, (4 * hidden_dim,), jnp.float32, -k, k)
        params["lstm"].append((w_ih, w_hh, b_ih, b_hh))
    key, k1, k2 = jax.random.split(key, 3)
    params["fc_w"] = jax.random.uniform(k1, (output_dim, hidden_dim), jnp.float32, -k, k)
    params["fc_b"] = jax.random.uniform(k2, (output_dim,), jnp.float32, -k, k)
    return params


if __name__ == "__main__":
    # Shapes consistent with the module's forward:
    # x: (batch=2, seq=8, input_dim=4), hidden_dim=32, num_layers=2, output_dim=1
    B, T, INPUT_DIM = 2, 8, 4
    HIDDEN_DIM, NUM_LAYERS, OUTPUT_DIM = 32, 2, 1

    key = jax.random.PRNGKey(0)
    key, xk = jax.random.split(key)
    x = jax.random.normal(xk, (B, T, INPUT_DIM), jnp.float32)
    params = init_params(key, INPUT_DIM, HIDDEN_DIM, NUM_LAYERS, OUTPUT_DIM)

    ref = lstm_model_ref(x, params, hidden_dim=HIDDEN_DIM, num_layers=NUM_LAYERS)

    # f32-operand path (recommended on v5e: no bf16 VPU/EUP, recurrence is
    # latency-bound on the MXU regardless of operand width).
    out_f32 = lstm_model_forward(
        x, params, hidden_dim=HIDDEN_DIM, num_layers=NUM_LAYERS,
        output_dim=OUTPUT_DIM, compute_dtype=jnp.float32)
    out_f32 = jax.block_until_ready(out_f32)
    assert out_f32.shape == (B, OUTPUT_DIM)
    assert jnp.allclose(out_f32, ref, atol=1e-3, rtol=1e-3), (out_f32, ref)

    # bf16-operand / f32-accumulate path (MXU-native on v6e/v7x), with two
    # parallel batch blocks so v7x's two TensorCores both get work.
    # NOTE: bf16 rounding compounds through T*num_layers dependent matmuls;
    # for deeper/longer configs keep the recurrent matmuls in f32 or scale tol.
    out_bf16 = lstm_model_forward(
        x, params, hidden_dim=HIDDEN_DIM, num_layers=NUM_LAYERS,
        output_dim=OUTPUT_DIM, compute_dtype=jnp.bfloat16,
        min_parallel_blocks=2)
    out_bf16 = jax.block_until_ready(out_bf16)
    assert out_bf16.shape == (B, OUTPUT_DIM)
    assert jnp.allclose(out_bf16, ref, atol=3e-2, rtol=3e-2), (out_bf16, ref)

    print("KERNEL_OK")
</pallas_src>

<mosaic_0001>
module attributes {stable_mosaic.version = 11 : i64} {
  func.func @kernel(%arg0: i32, %arg1: memref<1x64x4xf32, #tpu.memory_space<vmem>>, %arg2: memref<4x128xf32, #tpu.memory_space<vmem>>, %arg3: memref<32x128xf32, #tpu.memory_space<vmem>>, %arg4: memref<1x128xf32, #tpu.memory_space<vmem>>, %arg5: memref<64x128xf32, #tpu.memory_space<vmem>>, %arg6: memref<1x128xf32, #tpu.memory_space<vmem>>, %arg7: memref<1x32xf32, #tpu.memory_space<vmem>>, %arg8: memref<1x1xf32, #tpu.memory_space<vmem>>, %arg9: memref<1x8x1xf32, #tpu.memory_space<vmem>>, %arg10: memref<64x128xf32, #tpu.memory_space<vmem>>) attributes {dimension_semantics = [#tpu.dimension_semantics<parallel>], iteration_bounds = array<i64: 1>, scalar_prefetch = 0 : i64, scratch_operands = 1 : i64, tpu.core_type = #tpu.core_type<tc>, window_params = [{transform_indices = @transform_0, window_bounds = array<i64: 1, 64, 4>}, {pipeline_mode = #tpu.pipeline_mode<synchronous>, transform_indices = @transform_1, window_bounds = array<i64: 4, 128>}, {pipeline_mode = #tpu.pipeline_mode<synchronous>, transform_indices = @transform_2, window_bounds = array<i64: 32, 128>}, {pipeline_mode = #tpu.pipeline_mode<synchronous>, transform_indices = @transform_3, window_bounds = array<i64: 1, 128>}, {pipeline_mode = #tpu.pipeline_mode<synchronous>, transform_indices = @transform_4, window_bounds = array<i64: 64, 128>}, {pipeline_mode = #tpu.pipeline_mode<synchronous>, transform_indices = @transform_5, window_bounds = array<i64: 1, 128>}, {pipeline_mode = #tpu.pipeline_mode<synchronous>, transform_indices = @transform_6, window_bounds = array<i64: 1, 32>}, {pipeline_mode = #tpu.pipeline_mode<synchronous>, transform_indices = @transform_7, window_bounds = array<i64: 1, 1>}, {transform_indices = @transform_8, window_bounds = array<i64: 1, 8, 1>}]} {
    %c0 = arith.constant 0 : index
    %c0_0 = arith.constant 0 : index
    %c0_1 = arith.constant 0 : index
    %0 = vector.load %arg1[%c0, %c0_0, %c0_1] : memref<1x64x4xf32, #tpu.memory_space<vmem>>, vector<1x64x4xf32>
    %1 = vector.shape_cast %0 : vector<1x64x4xf32> to vector<64x4xf32>
    %c0_2 = arith.constant 0 : index
    %c0_3 = arith.constant 0 : index
    %2 = vector.load %arg2[%c0_2, %c0_3] : memref<4x128xf32, #tpu.memory_space<vmem>>, vector<4x128xf32>
    %cst = arith.constant dense<0.000000e+00> : vector<64x128xf32>
    %3 = tpu.matmul %1, %2, %cst {dimension_numbers = #tpu.dot_dimension_numbers<[1], [0], [0], [1], [0, 0, 1, 1], [], []>} : vector<64x4xf32>, vector<4x128xf32>, vector<64x128xf32> -> vector<64x128xf32>
    %c0_4 = arith.constant 0 : index
    %c0_5 = arith.constant 0 : index
    %4 = vector.load %arg4[%c0_4, %c0_5] : memref<1x128xf32, #tpu.memory_space<vmem>>, vector<1x128xf32>
    %5 = vector.broadcast %4 : vector<1x128xf32> to vector<64x128xf32>
    %6 = arith.addf %3, %5 : vector<64x128xf32>
    %c0_6 = arith.constant 0 : index
    %c0_7 = arith.constant 0 : index
    %7 = vector.load %arg10[%c0_6, %c0_7] : memref<64x128xf32, #tpu.memory_space<vmem>>, vector<64x128xf32>
    tpu.vector_store %arg10[%c0_6, %c0_7], %6 {strides = array<i32>} : memref<64x128xf32, #tpu.memory_space<vmem>>, vector<64x128xf32>,
    %c0_8 = arith.constant 0 : index
    %c0_9 = arith.constant 0 : index
    %8 = vector.load %arg3[%c0_8, %c0_9] : memref<32x128xf32, #tpu.memory_space<vmem>>, vector<32x128xf32>
    %c0_10 = arith.constant 0 : index
    %c0_11 = arith.constant 0 : index
    %9 = vector.load %arg5[%c0_10, %c0_11] : memref<64x128xf32, #tpu.memory_space<vmem>>, vector<64x128xf32>
    %c0_12 = arith.constant 0 : index
    %c0_13 = arith.constant 0 : index
    %10 = vector.load %arg6[%c0_12, %c0_13] : memref<1x128xf32, #tpu.memory_space<vmem>>, vector<1x128xf32>
    %cst_14 = arith.constant 0.000000e+00 : f32
    %11 = vector.broadcast %cst_14 : f32 to vector<8x32xf32>
    %cst_15 = arith.constant 0.000000e+00 : f32
    %12 = vector.broadcast %cst_15 : f32 to vector<8x32xf32>
    %cst_16 = arith.constant 0.000000e+00 : f32
    %13 = vector.broadcast %cst_16 : f32 to vector<8x32xf32>
    %cst_17 = arith.constant 0.000000e+00 : f32
    %14 = vector.broadcast %cst_17 : f32 to vector<8x32xf32>
    %c0_18 = arith.constant 0 : index
    %c0_19 = arith.constant 0 : index
    %15 = vector.load %arg10[%c0_18, %c0_19] : memref<64x128xf32, #tpu.memory_space<vmem>>, vector<8x128xf32>
    %cst_20 = arith.constant dense<0.000000e+00> : vector<8x128xf32>
    %16 = tpu.matmul %11, %8, %cst_20 {dimension_numbers = #tpu.dot_dimension_numbers<[1], [0], [0], [1], [0, 0, 1, 1], [], []>} : vector<8x32xf32>, vector<32x128xf32>, vector<8x128xf32> -> vector<8x128xf32>
    %17 = arith.addf %15, %16 : vector<8x128xf32>
    %18 = vector.extract_strided_slice %17 {offsets = [0, 0], sizes = [8, 96], strides = [1, 1]} : vector<8x128xf32> to vector<8x96xf32>
    %19 = arith.negf %18 : vector<8x96xf32>
    %20 = math.exp %19 : vector<8x96xf32>
    %cst_21 = arith.constant 1.000000e+00 : f32
    %21 = vector.broadcast %cst_21 : f32 to vector<8x96xf32>
    %22 = arith.addf %21, %20 : vector<8x96xf32>
    %23 = arith.divf %21, %22 : vector<8x96xf32>
    %24 = vector.extract_strided_slice %17 {offsets = [0, 96], sizes = [8, 32], strides = [1, 1]} : vector<8x128xf32> to vector<8x32xf32>
    %25 = math.tanh %24 : vector<8x32xf32>
    %26 = vector.extract_strided_slice %23 {offsets = [0, 0], sizes = [8, 32], strides = [1, 1]} : vector<8x96xf32> to vector<8x32xf32>
    %27 = vector.extract_strided_slice %23 {offsets = [0, 32], sizes = [8, 32], strides = [1, 1]} : vector<8x96xf32> to vector<8x32xf32>
    %28 = vector.extract_strided_slice %23 {offsets = [0, 64], sizes = [8, 32], strides = [1, 1]} : vector<8x96xf32> to vector<8x32xf32>
    %29 = arith.mulf %27, %13 : vector<8x32xf32>
    %30 = arith.mulf %26, %25 : vector<8x32xf32>
    %31 = arith.addf %29, %30 : vector<8x32xf32>
    %32 = math.tanh %31 : vector<8x32xf32>
    %33 = arith.mulf %28, %32 : vector<8x32xf32>
    %34 = tpu.concatenate %33, %12 in 1 : vector<8x32xf32>, vector<8x32xf32> -> vector<8x64xf32>
    %cst_22 = arith.constant dense<0.000000e+00> : vector<8x128xf32>
    %35 = tpu.matmul %34, %9, %cst_22 {dimension_numbers = #tpu.dot_dimension_numbers<[1], [0], [0], [1], [0, 0, 1, 1], [], []>} : vector<8x64xf32>, vector<64x128xf32>, vector<8x128xf32> -> vector<8x128xf32>
    %36 = vector.broadcast %10 : vector<1x128xf32> to vector<8x128xf32>
    %37 = arith.addf %35, %36 : vector<8x128xf32>
    %38 = vector.extract_strided_slice %37 {offsets = [0, 0], sizes = [8, 96], strides = [1, 1]} : vector<8x128xf32> to vector<8x96xf32>
    %39 = arith.negf %38 : vector<8x96xf32>
    %40 = math.exp %39 : vector<8x96xf32>
    %cst_23 = arith.constant 1.000000e+00 : f32
    %41 = vector.broadcast %cst_23 : f32 to vector<8x96xf32>
    %42 = arith.addf %41, %40 : vector<8x96xf32>
    %43 = arith.divf %41, %42 : vector<8x96xf32>
    %44 = vector.extract_strided_slice %37 {offsets = [0, 96], sizes = [8, 32], strides = [1, 1]} : vector<8x128xf32> to vector<8x32xf32>
    %45 = math.tanh %44 : vector<8x32xf32>
    %46 = vector.extract_strided_slice %43 {offsets = [0, 0], sizes = [8, 32], strides = [1, 1]} : vector<8x96xf32> to vector<8x32xf32>
    %47 = vector.extract_strided_slice %43 {offsets = [0, 32], sizes = [8, 32], strides = [1, 1]} : vector<8x96xf32> to vector<8x32xf32>
    %48 = vector.extract_strided_slice %43 {offsets = [0, 64], sizes = [8, 32], strides = [1, 1]} : vector<8x96xf32> to vector<8x32xf32>
    %49 = arith.mulf %47, %14 : vector<8x32xf32>
    %50 = arith.mulf %46, %45 : vector<8x32xf32>
    %51 = arith.addf %49, %50 : vector<8x32xf32>
    %52 = math.tanh %51 : vector<8x32xf32>
    %53 = arith.mulf %48, %52 : vector<8x32xf32>
    %c8 = arith.constant 8 : index
    %c0_24 = arith.constant 0 : index
    %54 = vector.load %arg10[%c8, %c0_24] : memref<64x128xf32, #tpu.memory_space<vmem>>, vector<8x128xf32>
    %cst_25 = arith.constant dense<0.000000e+00> : vector<8x128xf32>
    %55 = tpu.matmul %33, %8, %cst_25 {dimension_numbers = #tpu.dot_dimension_numbers<[1], [0], [0], [1], [0, 0, 1, 1], [], []>} : vector<8x32xf32>, vector<32x128xf32>, vector<8x128xf32> -> vector<8x128xf32>
    %56 = arith.addf %54, %55 : vector<8x128xf32>
    %57 = vector.extract_strided_slice %56 {offsets = [0, 0], sizes = [8, 96], strides = [1, 1]} : vector<8x128xf32> to vector<8x96xf32>
    %58 = arith.negf %57 : vector<8x96xf32>
    %59 = math.exp %58 : vector<8x96xf32>
    %cst_26 = arith.constant 1.000000e+00 : f32
    %60 = vector.broadcast %cst_26 : f32 to vector<8x96xf32>
    %61 = arith.addf %60, %59 : vector<8x96xf32>
    %62 = arith.divf %60, %61 : vector<8x96xf32>
    %63 = vector.extract_strided_slice %56 {offsets = [0, 96], sizes = [8, 32], strides = [1, 1]} : vector<8x128xf32> to vector<8x32xf32>
    %64 = math.tanh %63 : vector<8x32xf32>
    %65 = vector.extract_strided_slice %62 {offsets = [0, 0], sizes = [8, 32], strides = [1, 1]} : vector<8x96xf32> to vector<8x32xf32>
    %66 = vector.extract_strided_slice %62 {offsets = [0, 32], sizes = [8, 32], strides = [1, 1]} : vector<8x96xf32> to vector<8x32xf32>
    %67 = vector.extract_strided_slice %62 {offsets = [0, 64], sizes = [8, 32], strides = [1, 1]} : vector<8x96xf32> to vector<8x32xf32>
    %68 = arith.mulf %66, %31 : vector<8x32xf32>
    %69 = arith.mulf %65, %64 : vector<8x32xf32>
    %70 = arith.addf %68, %69 : vector<8x32xf32>
    %71 = math.tanh %70 : vector<8x32xf32>
    %72 = arith.mulf %67, %71 : vector<8x32xf32>
    %73 = tpu.concatenate %72, %53 in 1 : vector<8x32xf32>, vector<8x32xf32> -> vector<8x64xf32>
    %cst_27 = arith.constant dense<0.000000e+00> : vector<8x128xf32>
    %74 = tpu.matmul %73, %9, %cst_27 {dimension_numbers = #tpu.dot_dimension_numbers<[1], [0], [0], [1], [0, 0, 1, 1], [], []>} : vector<8x64xf32>, vector<64x128xf32>, vector<8x128xf32> -> vector<8x128xf32>
    %75 = vector.broadcast %10 : vector<1x128xf32> to vector<8x128xf32>
    %76 = arith.addf %74, %75 : vector<8x128xf32>
    %77 = vector.extract_strided_slice %76 {offsets = [0, 0], sizes = [8, 96], strides = [1, 1]} : vector<8x128xf32> to vector<8x96xf32>
    %78 = arith.negf %77 : vector<8x96xf32>
    %79 = math.exp %78 : vector<8x96xf32>
    %cst_28 = arith.constant 1.000000e+00 : f32
    %80 = vector.broadcast %cst_28 : f32 to vector<8x96xf32>
    %81 = arith.addf %80, %79 : vector<8x96xf32>
    %82 = arith.divf %80, %81 : vector<8x96xf32>
    %83 = vector.extract_strided_slice %76 {offsets = [0, 96], sizes = [8, 32], strides = [1, 1]} : vector<8x128xf32> to vector<8x32xf32>
    %84 = math.tanh %83 : vector<8x32xf32>
    %85 = vector.extract_strided_slice %82 {offsets = [0, 0], sizes = [8, 32], strides = [1, 1]} : vector<8x96xf32> to vector<8x32xf32>
    %86 = vector.extract_strided_slice %82 {offsets = [0, 32], sizes = [8, 32], strides = [1, 1]} : vector<8x96xf32> to vector<8x32xf32>
    %87 = vector.extract_strided_slice %82 {offsets = [0, 64], sizes = [8, 32], strides = [1, 1]} : vector<8x96xf32> to vector<8x32xf32>
    %88 = arith.mulf %86, %51 : vector<8x32xf32>
    %89 = arith.mulf %85, %84 : vector<8x32xf32>
    %90 = arith.addf %88, %89 : vector<8x32xf32>
    %91 = math.tanh %90 : vector<8x32xf32>
    %92 = arith.mulf %87, %91 : vector<8x32xf32>
    %c16 = arith.constant 16 : index
    %c0_29 = arith.constant 0 : index
    %93 = vector.load %arg10[%c16, %c0_29] : memref<64x128xf32, #tpu.memory_space<vmem>>, vector<8x128xf32>
    %cst_30 = arith.constant dense<0.000000e+00> : vector<8x128xf32>
    %94 = tpu.matmul %72, %8, %cst_30 {dimension_numbers = #tpu.dot_dimension_numbers<[1], [0], [0], [1], [0, 0, 1, 1], [], []>} : vector<8x32xf32>, vector<32x128xf32>, vector<8x128xf32> -> vector<8x128xf32>
    %95 = arith.addf %93, %94 : vector<8x128xf32>
    %96 = vector.extract_strided_slice %95 {offsets = [0, 0], sizes = [8, 96], strides = [1, 1]} : vector<8x128xf32> to vector<8x96xf32>
    %97 = arith.negf %96 : vector<8x96xf32>
    %98 = math.exp %97 : vector<8x96xf32>
    %cst_31 = arith.constant 1.000000e+00 : f32
    %99 = vector.broadcast %cst_31 : f32 to vector<8x96xf32>
    %100 = arith.addf %99, %98 : vector<8x96xf32>
    %101 = arith.divf %99, %100 : vector<8x96xf32>
    %102 = vector.extract_strided_slice %95 {offsets = [0, 96], sizes = [8, 32], strides = [1, 1]} : vector<8x128xf32> to vector<8x32xf32>
    %103 = math.tanh %102 : vector<8x32xf32>
    %104 = vector.extract_strided_slice %101 {offsets = [0, 0], sizes = [8, 32], strides = [1, 1]} : vector<8x96xf32> to vector<8x32xf32>
    %105 = vector.extract_strided_slice %101 {offsets = [0, 32], sizes = [8, 32], strides = [1, 1]} : vector<8x96xf32> to vector<8x32xf32>
    %106 = vector.extract_strided_slice %101 {offsets = [0, 64], sizes = [8, 32], strides = [1, 1]} : vector<8x96xf32> to vector<8x32xf32>
    %107 = arith.mulf %105, %70 : vector<8x32xf32>
    %108 = arith.mulf %104, %103 : vector<8x32xf32>
    %109 = arith.addf %107, %108 : vector<8x32xf32>
    %110 = math.tanh %109 : vector<8x32xf32>
    %111 = arith.mulf %106, %110 : vector<8x32xf32>
    %112 = tpu.concatenate %111, %92 in 1 : vector<8x32xf32>, vector<8x32xf32> -> vector<8x64xf32>
    %cst_32 = arith.constant dense<0.000000e+00> : vector<8x128xf32>
    %113 = tpu.matmul %112, %9, %cst_32 {dimension_numbers = #tpu.dot_dimension_numbers<[1], [0], [0], [1], [0, 0, 1, 1], [], []>} : vector<8x64xf32>, vector<64x128xf32>, vector<8x128xf32> -> vector<8x128xf32>
    %114 = vector.broadcast %10 : vector<1x128xf32> to vector<8x128xf32>
    %115 = arith.addf %113, %114 : vector<8x128xf32>
    %116 = vector.extract_strided_slice %115 {offsets = [0, 0], sizes = [8, 96], strides = [1, 1]} : vector<8x128xf32> to vector<8x96xf32>
    %117 = arith.negf %116 : vector<8x96xf32>
    %118 = math.exp %117 : vector<8x96xf32>
    %cst_33 = arith.constant 1.000000e+00 : f32
    %119 = vector.broadcast %cst_33 : f32 to vector<8x96xf32>
    %120 = arith.addf %119, %118 : vector<8x96xf32>
    %121 = arith.divf %119, %120 : vector<8x96xf32>
    %122 = vector.extract_strided_slice %115 {offsets = [0, 96], sizes = [8, 32], strides = [1, 1]} : vector<8x128xf32> to vector<8x32xf32>
    %123 = math.tanh %122 : vector<8x32xf32>
    %124 = vector.extract_strided_slice %121 {offsets = [0, 0], sizes = [8, 32], strides = [1, 1]} : vector<8x96xf32> to vector<8x32xf32>
    %125 = vector.extract_strided_slice %121 {offsets = [0, 32], sizes = [8, 32], strides = [1, 1]} : vector<8x96xf32> to vector<8x32xf32>
    %126 = vector.extract_strided_slice %121 {offsets = [0, 64], sizes = [8, 32], strides = [1, 1]} : vector<8x96xf32> to vector<8x32xf32>
    %127 = arith.mulf %125, %90 : vector<8x32xf32>
    %128 = arith.mulf %124, %123 : vector<8x32xf32>
    %129 = arith.addf %127, %128 : vector<8x32xf32>
    %130 = math.tanh %129 : vector<8x32xf32>
    %131 = arith.mulf %126, %130 : vector<8x32xf32>
    %c24 = arith.constant 24 : index
    %c0_34 = arith.constant 0 : index
    %132 = vector.load %arg10[%c24, %c0_34] : memref<64x128xf32, #tpu.memory_space<vmem>>, vector<8x128xf32>
    %cst_35 = arith.constant dense<0.000000e+00> : vector<8x128xf32>
    %133 = tpu.matmul %111, %8, %cst_35 {dimension_numbers = #tpu.dot_dimension_numbers<[1], [0], [0], [1], [0, 0, 1, 1], [], []>} : vector<8x32xf32>, vector<32x128xf32>, vector<8x128xf32> -> vector<8x128xf32>
    %134 = arith.addf %132, %133 : vector<8x128xf32>
    %135 = vector.extract_strided_slice %134 {offsets = [0, 0], sizes = [8, 96], strides = [1, 1]} : vector<8x128xf32> to vector<8x96xf32>
    %136 = arith.negf %135 : vector<8x96xf32>
    %137 = math.exp %136 : vector<8x96xf32>
    %cst_36 = arith.constant 1.000000e+00 : f32
    %138 = vector.broadcast %cst_36 : f32 to vector<8x96xf32>
    %139 = arith.addf %138, %137 : vector<8x96xf32>
    %140 = arith.divf %138, %139 : vector<8x96xf32>
    %141 = vector.extract_strided_slice %134 {offsets = [0, 96], sizes = [8, 32], strides = [1, 1]} : vector<8x128xf32> to vector<8x32xf32>
    %142 = math.tanh %141 : vector<8x32xf32>
    %143 = vector.extract_strided_slice %140 {offsets = [0, 0], sizes = [8, 32], strides = [1, 1]} : vector<8x96xf32> to vector<8x32xf32>
    %144 = vector.extract_strided_slice %140 {offsets = [0, 32], sizes = [8, 32], strides = [1, 1]} : vector<8x96xf32> to vector<8x32xf32>
    %145 = vector.extract_strided_slice %140 {offsets = [0, 64], sizes = [8, 32], strides = [1, 1]} : vector<8x96xf32> to vector<8x32xf32>
    %146 = arith.mulf %144, %109 : vector<8x32xf32>
    %147 = arith.mulf %143, %142 : vector<8x32xf32>
    %148 = arith.addf %146, %147 : vector<8x32xf32>
    %149 = math.tanh %148 : vector<8x32xf32>
    %150 = arith.mulf %145, %149 : vector<8x32xf32>
    %151 = tpu.concatenate %150, %131 in 1 : vector<8x32xf32>, vector<8x32xf32> -> vector<8x64xf32>
    %cst_37 = arith.constant dense<0.000000e+00> : vector<8x128xf32>
    %152 = tpu.matmul %151, %9, %cst_37 {dimension_numbers = #tpu.dot_dimension_numbers<[1], [0], [0], [1], [0, 0, 1, 1], [], []>} : vector<8x64xf32>, vector<64x128xf32>, vector<8x128xf32> -> vector<8x128xf32>
    %153 = vector.broadcast %10 : vector<1x128xf32> to vector<8x128xf32>
    %154 = arith.addf %152, %153 : vector<8x128xf32>
    %155 = vector.extract_strided_slice %154 {offsets = [0, 0], sizes = [8, 96], strides = [1, 1]} : vector<8x128xf32> to vector<8x96xf32>
    %156 = arith.negf %155 : vector<8x96xf32>
    %157 = math.exp %156 : vector<8x96xf32>
    %cst_38 = arith.constant 1.000000e+00 : f32
    %158 = vector.broadcast %cst_38 : f32 to vector<8x96xf32>
    %159 = arith.addf %158, %157 : vector<8x96xf32>
    %160 = arith.divf %158, %159 : vector<8x96xf32>
    %161 = vector.extract_strided_slice %154 {offsets = [0, 96], sizes = [8, 32], strides = [1, 1]} : vector<8x128xf32> to vector<8x32xf32>
    %162 = math.tanh %161 : vector<8x32xf32>
    %163 = vector.extract_strided_slice %160 {offsets = [0, 0], sizes = [8, 32], strides = [1, 1]} : vector<8x96xf32> to vector<8x32xf32>
    %164 = vector.extract_strided_slice %160 {offsets = [0, 32], sizes = [8, 32], strides = [1, 1]} : vector<8x96xf32> to vector<8x32xf32>
    %165 = vector.extract_strided_slice %160 {offsets = [0, 64], sizes = [8, 32], strides = [1, 1]} : vector<8x96xf32> to vector<8x32xf32>
    %166 = arith.mulf %164, %129 : vector<8x32xf32>
    %167 = arith.mulf %163, %162 : vector<8x32xf32>
    %168 = arith.addf %166, %167 : vector<8x32xf32>
    %169 = math.tanh %168 : vector<8x32xf32>
    %170 = arith.mulf %165, %169 : vector<8x32xf32>
    %c32 = arith.constant 32 : index
    %c0_39 = arith.constant 0 : index
    %171 = vector.load %arg10[%c32, %c0_39] : memref<64x128xf32, #tpu.memory_space<vmem>>, vector<8x128xf32>
    %cst_40 = arith.constant dense<0.000000e+00> : vector<8x128xf32>
    %172 = tpu.matmul %150, %8, %cst_40 {dimension_numbers = #tpu.dot_dimension_numbers<[1], [0], [0], [1], [0, 0, 1, 1], [], []>} : vector<8x32xf32>, vector<32x128xf32>, vector<8x128xf32> -> vector<8x128xf32>
    %173 = arith.addf %171, %172 : vector<8x128xf32>
    %174 = vector.extract_strided_slice %173 {offsets = [0, 0], sizes = [8, 96], strides = [1, 1]} : vector<8x128xf32> to vector<8x96xf32>
    %175 = arith.negf %174 : vector<8x96xf32>
    %176 = math.exp %175 : vector<8x96xf32>
    %cst_41 = arith.constant 1.000000e+00 : f32
    %177 = vector.broadcast %cst_41 : f32 to vector<8x96xf32>
    %178 = arith.addf %177, %176 : vector<8x96xf32>
    %179 = arith.divf %177, %178 : vector<8x96xf32>
    %180 = vector.extract_strided_slice %173 {offsets = [0, 96], sizes = [8, 32], strides = [1, 1]} : vector<8x128xf32> to vector<8x32xf32>
    %181 = math.tanh %180 : vector<8x32xf32>
    %182 = vector.extract_strided_slice %179 {offsets = [0, 0], sizes = [8, 32], strides = [1, 1]} : vector<8x96xf32> to vector<8x32xf32>
    %183 = vector.extract_strided_slice %179 {offsets = [0, 32], sizes = [8, 32], strides = [1, 1]} : vector<8x96xf32> to vector<8x32xf32>
    %184 = vector.extract_strided_slice %179 {offsets = [0, 64], sizes = [8, 32], strides = [1, 1]} : vector<8x96xf32> to vector<8x32xf32>
    %185 = arith.mulf %183, %148 : vector<8x32xf32>
    %186 = arith.mulf %182, %181 : vector<8x32xf32>
    %187 = arith.addf %185, %186 : vector<8x32xf32>
    %188 = math.tanh %187 : vector<8x32xf32>
    %189 = arith.mulf %184, %188 : vector<8x32xf32>
    %190 = tpu.concatenate %189, %170 in 1 : vector<8x32xf32>, vector<8x32xf32> -> vector<8x64xf32>
    %cst_42 = arith.constant dense<0.000000e+00> : vector<8x128xf32>
    %191 = tpu.matmul %190, %9, %cst_42 {dimension_numbers = #tpu.dot_dimension_numbers<[1], [0], [0], [1], [0, 0, 1, 1], [], []>} : vector<8x64xf32>, vector<64x128xf32>, vector<8x128xf32> -> vector<8x128xf32>
    %192 = vector.broadcast %10 : vector<1x128xf32> to vector<8x128xf32>
    %193 = arith.addf %191, %192 : vector<8x128xf32>
    %194 = vector.extract_strided_slice %193 {offsets = [0, 0], sizes = [8, 96], strides = [1, 1]} : vector<8x128xf32> to vector<8x96xf32>
    %195 = arith.negf %194 : vector<8x96xf32>
    %196 = math.exp %195 : vector<8x96xf32>
    %cst_43 = arith.constant 1.000000e+00 : f32
    %197 = vector.broadcast %cst_43 : f32 to vector<8x96xf32>
    %198 = arith.addf %197, %196 : vector<8x96xf32>
    %199 = arith.divf %197, %198 : vector<8x96xf32>
    %200 = vector.extract_strided_slice %193 {offsets = [0, 96], sizes = [8, 32], strides = [1, 1]} : vector<8x128xf32> to vector<8x32xf32>
    %201 = math.tanh %200 : vector<8x32xf32>
    %202 = vector.extract_strided_slice %199 {offsets = [0, 0], sizes = [8, 32], strides = [1, 1]} : vector<8x96xf32> to vector<8x32xf32>
    %203 = vector.extract_strided_slice %199 {offsets = [0, 32], sizes = [8, 32], strides = [1, 1]} : vector<8x96xf32> to vector<8x32xf32>
    %204 = vector.extract_strided_slice %199 {offsets = [0, 64], sizes = [8, 32], strides = [1, 1]} : vector<8x96xf32> to vector<8x32xf32>
    %205 = arith.mulf %203, %168 : vector<8x32xf32>
    %206 = arith.mulf %202, %201 : vector<8x32xf32>
    %207 = arith.addf %205, %206 : vector<8x32xf32>
    %208 = math.tanh %207 : vector<8x32xf32>
    %209 = arith.mulf %204, %208 : vector<8x32xf32>
    %c40 = arith.constant 40 : index
    %c0_44 = arith.constant 0 : index
    %210 = vector.load %arg10[%c40, %c0_44] : memref<64x128xf32, #tpu.memory_space<vmem>>, vector<8x128xf32>
    %cst_45 = arith.constant dense<0.000000e+00> : vector<8x128xf32>
    %211 = tpu.matmul %189, %8, %cst_45 {dimension_numbers = #tpu.dot_dimension_numbers<[1], [0], [0], [1], [0, 0, 1, 1], [], []>} : vector<8x32xf32>, vector<32x128xf32>, vector<8x128xf32> -> vector<8x128xf32>
    %212 = arith.addf %210, %211 : vector<8x128xf32>
    %213 = vector.extract_strided_slice %212 {offsets = [0, 0], sizes = [8, 96], strides = [1, 1]} : vector<8x128xf32> to vector<8x96xf32>
    %214 = arith.negf %213 : vector<8x96xf32>
    %215 = math.exp %214 : vector<8x96xf32>
    %cst_46 = arith.constant 1.000000e+00 : f32
    %216 = vector.broadcast %cst_46 : f32 to vector<8x96xf32>
    %217 = arith.addf %216, %215 : vector<8x96xf32>
    %218 = arith.divf %216, %217 : vector<8x96xf32>
    %219 = vector.extract_strided_slice %212 {offsets = [0, 96], sizes = [8, 32], strides = [1, 1]} : vector<8x128xf32> to vector<8x32xf32>
    %220 = math.tanh %219 : vector<8x32xf32>
    %221 = vector.extract_strided_slice %218 {offsets = [0, 0], sizes = [8, 32], strides = [1, 1]} : vector<8x96xf32> to vector<8x32xf32>
    %222 = vector.extract_strided_slice %218 {offsets = [0, 32], sizes = [8, 32], strides = [1, 1]} : vector<8x96xf32> to vector<8x32xf32>
    %223 = vector.extract_strided_slice %218 {offsets = [0, 64], sizes = [8, 32], strides = [1, 1]} : vector<8x96xf32> to vector<8x32xf32>
    %224 = arith.mulf %222, %187 : vector<8x32xf32>
    %225 = arith.mulf %221, %220 : vector<8x32xf32>
    %226 = arith.addf %224, %225 : vector<8x32xf32>
    %227 = math.tanh %226 : vector<8x32xf32>
    %228 = arith.mulf %223, %227 : vector<8x32xf32>
    %229 = tpu.concatenate %228, %209 in 1 : vector<8x32xf32>, vector<8x32xf32> -> vector<8x64xf32>
    %cst_47 = arith.constant dense<0.000000e+00> : vector<8x128xf32>
    %230 = tpu.matmul %229, %9, %cst_47 {dimension_numbers = #tpu.dot_dimension_numbers<[1], [0], [0], [1], [0, 0, 1, 1], [], []>} : vector<8x64xf32>, vector<64x128xf32>, vector<8x128xf32> -> vector<8x128xf32>
    %231 = vector.broadcast %10 : vector<1x128xf32> to vector<8x128xf32>
    %232 = arith.addf %230, %231 : vector<8x128xf32>
    %233 = vector.extract_strided_slice %232 {offsets = [0, 0], sizes = [8, 96], strides = [1, 1]} : vector<8x128xf32> to vector<8x96xf32>
    %234 = arith.negf %233 : vector<8x96xf32>
    %235 = math.exp %234 : vector<8x96xf32>
    %cst_48 = arith.constant 1.000000e+00 : f32
    %236 = vector.broadcast %cst_48 : f32 to vector<8x96xf32>
    %237 = arith.addf %236, %235 : vector<8x96xf32>
    %238 = arith.divf %236, %237 : vector<8x96xf32>
    %239 = vector.extract_strided_slice %232 {offsets = [0, 96], sizes = [8, 32], strides = [1, 1]} : vector<8x128xf32> to vector<8x32xf32>
    %240 = math.tanh %239 : vector<8x32xf32>
    %241 = vector.extract_strided_slice %238 {offsets = [0, 0], sizes = [8, 32], strides = [1, 1]} : vector<8x96xf32> to vector<8x32xf32>
    %242 = vector.extract_strided_slice %238 {offsets = [0, 32], sizes = [8, 32], strides = [1, 1]} : vector<8x96xf32> to vector<8x32xf32>
    %243 = vector.extract_strided_slice %238 {offsets = [0, 64], sizes = [8, 32], strides = [1, 1]} : vector<8x96xf32> to vector<8x32xf32>
    %244 = arith.mulf %242, %207 : vector<8x32xf32>
    %245 = arith.mulf %241, %240 : vector<8x32xf32>
    %246 = arith.addf %244, %245 : vector<8x32xf32>
    %247 = math.tanh %246 : vector<8x32xf32>
    %248 = arith.mulf %243, %247 : vector<8x32xf32>
    %c48 = arith.constant 48 : index
    %c0_49 = arith.constant 0 : index
    %249 = vector.load %arg10[%c48, %c0_49] : memref<64x128xf32, #tpu.memory_space<vmem>>, vector<8x128xf32>
    %cst_50 = arith.constant dense<0.000000e+00> : vector<8x128xf32>
    %250 = tpu.matmul %228, %8, %cst_50 {dimension_numbers = #tpu.dot_dimension_numbers<[1], [0], [0], [1], [0, 0, 1, 1], [], []>} : vector<8x32xf32>, vector<32x128xf32>, vector<8x128xf32> -> vector<8x128xf32>
    %251 = arith.addf %249, %250 : vector<8x128xf32>
    %252 = vector.extract_strided_slice %251 {offsets = [0, 0], sizes = [8, 96], strides = [1, 1]} : vector<8x128xf32> to vector<8x96xf32>
    %253 = arith.negf %252 : vector<8x96xf32>
    %254 = math.exp %253 : vector<8x96xf32>
    %cst_51 = arith.constant 1.000000e+00 : f32
    %255 = vector.broadcast %cst_51 : f32 to vector<8x96xf32>
    %256 = arith.addf %255, %254 : vector<8x96xf32>
    %257 = arith.divf %255, %256 : vector<8x96xf32>
    %258 = vector.extract_strided_slice %251 {offsets = [0, 96], sizes = [8, 32], strides = [1, 1]} : vector<8x128xf32> to vector<8x32xf32>
    %259 = math.tanh %258 : vector<8x32xf32>
    %260 = vector.extract_strided_slice %257 {offsets = [0, 0], sizes = [8, 32], strides = [1, 1]} : vector<8x96xf32> to vector<8x32xf32>
    %261 = vector.extract_strided_slice %257 {offsets = [0, 32], sizes = [8, 32], strides = [1, 1]} : vector<8x96xf32> to vector<8x32xf32>
    %262 = vector.extract_strided_slice %257 {offsets = [0, 64], sizes = [8, 32], strides = [1, 1]} : vector<8x96xf32> to vector<8x32xf32>
    %263 = arith.mulf %261, %226 : vector<8x32xf32>
    %264 = arith.mulf %260, %259 : vector<8x32xf32>
    %265 = arith.addf %263, %264 : vector<8x32xf32>
    %266 = math.tanh %265 : vector<8x32xf32>
    %267 = arith.mulf %262, %266 : vector<8x32xf32>
    %268 = tpu.concatenate %267, %248 in 1 : vector<8x32xf32>, vector<8x32xf32> -> vector<8x64xf32>
    %cst_52 = arith.constant dense<0.000000e+00> : vector<8x128xf32>
    %269 = tpu.matmul %268, %9, %cst_52 {dimension_numbers = #tpu.dot_dimension_numbers<[1], [0], [0], [1], [0, 0, 1, 1], [], []>} : vector<8x64xf32>, vector<64x128xf32>, vector<8x128xf32> -> vector<8x128xf32>
    %270 = vector.broadcast %10 : vector<1x128xf32> to vector<8x128xf32>
    %271 = arith.addf %269, %270 : vector<8x128xf32>
    %272 = vector.extract_strided_slice %271 {offsets = [0, 0], sizes = [8, 96], strides = [1, 1]} : vector<8x128xf32> to vector<8x96xf32>
    %273 = arith.negf %272 : vector<8x96xf32>
    %274 = math.exp %273 : vector<8x96xf32>
    %cst_53 = arith.constant 1.000000e+00 : f32
    %275 = vector.broadcast %cst_53 : f32 to vector<8x96xf32>
    %276 = arith.addf %275, %274 : vector<8x96xf32>
    %277 = arith.divf %275, %276 : vector<8x96xf32>
    %278 = vector.extract_strided_slice %271 {offsets = [0, 96], sizes = [8, 32], strides = [1, 1]} : vector<8x128xf32> to vector<8x32xf32>
    %279 = math.tanh %278 : vector<8x32xf32>
    %280 = vector.extract_strided_slice %277 {offsets = [0, 0], sizes = [8, 32], strides = [1, 1]} : vector<8x96xf32> to vector<8x32xf32>
    %281 = vector.extract_strided_slice %277 {offsets = [0, 32], sizes = [8, 32], strides = [1, 1]} : vector<8x96xf32> to vector<8x32xf32>
    %282 = vector.extract_strided_slice %277 {offsets = [0, 64], sizes = [8, 32], strides = [1, 1]} : vector<8x96xf32> to vector<8x32xf32>
    %283 = arith.mulf %281, %246 : vector<8x32xf32>
    %284 = arith.mulf %280, %279 : vector<8x32xf32>
    %285 = arith.addf %283, %284 : vector<8x32xf32>
    %286 = math.tanh %285 : vector<8x32xf32>
    %287 = arith.mulf %282, %286 : vector<8x32xf32>
    %c56 = arith.constant 56 : index
    %c0_54 = arith.constant 0 : index
    %288 = vector.load %arg10[%c56, %c0_54] : memref<64x128xf32, #tpu.memory_space<vmem>>, vector<8x128xf32>
    %cst_55 = arith.constant dense<0.000000e+00> : vector<8x128xf32>
    %289 = tpu.matmul %267, %8, %cst_55 {dimension_numbers = #tpu.dot_dimension_numbers<[1], [0], [0], [1], [0, 0, 1, 1], [], []>} : vector<8x32xf32>, vector<32x128xf32>, vector<8x128xf32> -> vector<8x128xf32>
    %290 = arith.addf %288, %289 : vector<8x128xf32>
    %291 = vector.extract_strided_slice %290 {offsets = [0, 0], sizes = [8, 96], strides = [1, 1]} : vector<8x128xf32> to vector<8x96xf32>
    %292 = arith.negf %291 : vector<8x96xf32>
    %293 = math.exp %292 : vector<8x96xf32>
    %cst_56 = arith.constant 1.000000e+00 : f32
    %294 = vector.broadcast %cst_56 : f32 to vector<8x96xf32>
    %295 = arith.addf %294, %293 : vector<8x96xf32>
    %296 = arith.divf %294, %295 : vector<8x96xf32>
    %297 = vector.extract_strided_slice %290 {offsets = [0, 96], sizes = [8, 32], strides = [1, 1]} : vector<8x128xf32> to vector<8x32xf32>
    %298 = math.tanh %297 : vector<8x32xf32>
    %299 = vector.extract_strided_slice %296 {offsets = [0, 0], sizes = [8, 32], strides = [1, 1]} : vector<8x96xf32> to vector<8x32xf32>
    %300 = vector.extract_strided_slice %296 {offsets = [0, 32], sizes = [8, 32], strides = [1, 1]} : vector<8x96xf32> to vector<8x32xf32>
    %301 = vector.extract_strided_slice %296 {offsets = [0, 64], sizes = [8, 32], strides = [1, 1]} : vector<8x96xf32> to vector<8x32xf32>
    %302 = arith.mulf %300, %265 : vector<8x32xf32>
    %303 = arith.mulf %299, %298 : vector<8x32xf32>
    %304 = arith.addf %302, %303 : vector<8x32xf32>
    %305 = math.tanh %304 : vector<8x32xf32>
    %306 = arith.mulf %301, %305 : vector<8x32xf32>
    %307 = tpu.concatenate %306, %287 in 1 : vector<8x32xf32>, vector<8x32xf32> -> vector<8x64xf32>
    %cst_57 = arith.constant dense<0.000000e+00> : vector<8x128xf32>
    %308 = tpu.matmul %307, %9, %cst_57 {dimension_numbers = #tpu.dot_dimension_numbers<[1], [0], [0], [1], [0, 0, 1, 1], [], []>} : vector<8x64xf32>, vector<64x128xf32>, vector<8x128xf32> -> vector<8x128xf32>
    %309 = vector.broadcast %10 : vector<1x128xf32> to vector<8x128xf32>
    %310 = arith.addf %308, %309 : vector<8x128xf32>
    %311 = vector.extract_strided_slice %310 {offsets = [0, 0], sizes = [8, 96], strides = [1, 1]} : vector<8x128xf32> to vector<8x96xf32>
    %312 = arith.negf %311 : vector<8x96xf32>
    %313 = math.exp %312 : vector<8x96xf32>
    %cst_58 = arith.constant 1.000000e+00 : f32
    %314 = vector.broadcast %cst_58 : f32 to vector<8x96xf32>
    %315 = arith.addf %314, %313 : vector<8x96xf32>
    %316 = arith.divf %314, %315 : vector<8x96xf32>
    %317 = vector.extract_strided_slice %310 {offsets = [0, 96], sizes = [8, 32], strides = [1, 1]} : vector<8x128xf32> to vector<8x32xf32>
    %318 = math.tanh %317 : vector<8x32xf32>
    %319 = vector.extract_strided_slice %316 {offsets = [0, 0], sizes = [8, 32], strides = [1, 1]} : vector<8x96xf32> to vector<8x32xf32>
    %320 = vector.extract_strided_slice %316 {offsets = [0, 32], sizes = [8, 32], strides = [1, 1]} : vector<8x96xf32> to vector<8x32xf32>
    %321 = vector.extract_strided_slice %316 {offsets = [0, 64], sizes = [8, 32], strides = [1, 1]} : vector<8x96xf32> to vector<8x32xf32>
    %322 = arith.mulf %320, %285 : vector<8x32xf32>
    %323 = arith.mulf %319, %318 : vector<8x32xf32>
    %324 = arith.addf %322, %323 : vector<8x32xf32>
    %325 = math.tanh %324 : vector<8x32xf32>
    %326 = arith.mulf %321, %325 : vector<8x32xf32>
    %c0_59 = arith.constant 0 : index
    %c0_60 = arith.constant 0 : index
    %327 = vector.load %arg7[%c0_59, %c0_60] : memref<1x32xf32, #tpu.memory_space<vmem>>, vector<1x32xf32>
    %328 = vector.broadcast %327 : vector<1x32xf32> to vector<8x32xf32>
    %329 = arith.mulf %326, %328 : vector<8x32xf32>
    %cst_61 = arith.constant dense<0.000000e+00> : vector<8xf32>
    %330 = vector.multi_reduction <add>, %329, %cst_61 [1] : vector<8x32xf32> to vector<8xf32>
    %331 = vector.shape_cast %330 : vector<8xf32> to vector<8x1xf32>
    %c0_62 = arith.constant 0 : index
    %c0_63 = arith.constant 0 : index
    %332 = vector.load %arg8[%c0_62, %c0_63] : memref<1x1xf32, #tpu.memory_space<vmem>>, vector<1x1xf32>
    %333 = vector.broadcast %332 : vector<1x1xf32> to vector<8x1xf32>
    %334 = arith.addf %331, %333 : vector<8x1xf32>
    %c0_64 = arith.constant 0 : index
    %c0_65 = arith.constant 0 : index
    %c0_66 = arith.constant 0 : index
    %335 = vector.load %arg9[%c0_64, %c0_65, %c0_66] : memref<1x8x1xf32, #tpu.memory_space<vmem>>, vector<1x8x1xf32>
    %336 = vector.shape_cast %335 : vector<1x8x1xf32> to vector<8x1xf32>
    %337 = vector.shape_cast %334 : vector<8x1xf32> to vector<1x8x1xf32>
    tpu.vector_store %arg9[%c0_64, %c0_65, %c0_66], %337 {strides = array<i32>} : memref<1x8x1xf32, #tpu.memory_space<vmem>>, vector<1x8x1xf32>,
    return
  }
  func.func @transform_0(%arg0: i32) -> (i32, i32, i32) {
    %c0_i32 = arith.constant 0 : i32
    %c0_i32_0 = arith.constant 0 : i32
    %c0_i32_1 = arith.constant 0 : i32
    return %arg0, %c0_i32, %c0_i32_0 : i32, i32, i32
  }
  func.func @transform_1(%arg0: i32) -> (i32, i32) {
    %c0_i32 = arith.constant 0 : i32
    %c0_i32_0 = arith.constant 0 : i32
    %c0_i32_1 = arith.constant 0 : i32
    return %c0_i32, %c0_i32_0 : i32, i32
  }
  func.func @transform_2(%arg0: i32) -> (i32, i32) {
    %c0_i32 = arith.constant 0 : i32
    %c0_i32_0 = arith.constant 0 : i32
    %c0_i32_1 = arith.constant 0 : i32
    return %c0_i32, %c0_i32_0 : i32, i32
  }
  func.func @transform_3(%arg0: i32) -> (i32, i32) {
    %c0_i32 = arith.constant 0 : i32
    %c0_i32_0 = arith.constant 0 : i32
    %c0_i32_1 = arith.constant 0 : i32
    return %c0_i32, %c0_i32_0 : i32, i32
  }
  func.func @transform_4(%arg0: i32) -> (i32, i32) {
    %c0_i32 = arith.constant 0 : i32
    %c0_i32_0 = arith.constant 0 : i32
    %c0_i32_1 = arith.constant 0 : i32
    return %c0_i32, %c0_i32_0 : i32, i32
  }
  func.func @transform_5(%arg0: i32) -> (i32, i32) {
    %c0_i32 = arith.constant 0 : i32
    %c0_i32_0 = arith.constant 0 : i32
    %c0_i32_1 = arith.constant 0 : i32
    return %c0_i32, %c0_i32_0 : i32, i32
  }
  func.func @transform_6(%arg0: i32) -> (i32, i32) {
    %c0_i32 = arith.constant 0 : i32
    %c0_i32_0 = arith.constant 0 : i32
    %c0_i32_1 = arith.constant 0 : i32
    return %c0_i32, %c0_i32_0 : i32, i32
  }
  func.func @transform_7(%arg0: i32) -> (i32, i32) {
    %c0_i32 = arith.constant 0 : i32
    %c0_i32_0 = arith.constant 0 : i32
    %c0_i32_1 = arith.constant 0 : i32
    return %c0_i32, %c0_i32_0 : i32, i32
  }
  func.func @transform_8(%arg0: i32) -> (i32, i32, i32) {
    %c0_i32 = arith.constant 0 : i32
    %c0_i32_0 = arith.constant 0 : i32
    %c0_i32_1 = arith.constant 0 : i32
    return %arg0, %c0_i32, %c0_i32_0 : i32, i32, i32
  }
}

</mosaic_0001>

<llo_original>
// kernel: tpu_custom_call.1
$region0: #{tpu_custom_call.1}
  #allocation0 [shape = 'u32[]', space=smem, size = 0x4, offset = 0x4, fixed_abs, tag = 'smem constant byte address 0x4 - core index']
  #allocation1 [shape = 'u32[72,128]{1,0:T(1,128)}', space=vmem, size = 0x9000, scoped, tag = 'internal scratch']
  #allocation2 [shape = 'f32[64,128]{1,0:T(8,128)}', space=vmem, size = 0x8000, scoped, tag = 'scratch operand']
  #allocation3 [shape = 'f32[1,1]{1,0:T(1,128)S(1)}', space=vmem, size = 0x200, scoped, tag = 'scoped memory for tpu_custom_call.1']
  %s0 = inlined_call_operand.vmem [shape: f32[1,64,4], index: 0, kind: input, shape index: {}]
  %s1 = inlined_call_operand.vmem [shape: f32[4,128], index: 1, kind: input, shape index: {}]
  %s2 = inlined_call_operand.hbm [shape: f32[32,128], index: 2, kind: input, shape index: {}]
  %s3 = inlined_call_operand.vmem [shape: f32[1,128], index: 3, kind: input, shape index: {}]
  %s4 = inlined_call_operand.vmem [shape: f32[64,128], index: 4, kind: input, shape index: {}]
  %s5 = inlined_call_operand.vmem [shape: f32[1,128], index: 5, kind: input, shape index: {}]
  %s6 = inlined_call_operand.vmem [shape: f32[1,32], index: 6, kind: input, shape index: {}]
  %s7 = inlined_call_operand.<no memory space> [shape: f32[1,1], index: 7, kind: input, shape index: {}]
  %s8 = inlined_call_operand.vmem [shape: f32[1,8,1], index: 8, kind: output, shape index: {}]
  %s9 = sld [smem:[#allocation0]]
  $region46: #{tpu_custom_call.1} parent=0
    _
  %s11 = ssub.s32 1, %s9
  %s12 = scalar_select 0, %s11, %s9
  %v13 = vstv %s7
  %14 = vst [vmem:[#allocation3] sm:$0x1] %v13
  $region1: #{tpu_custom_call.1} parent=0
    #allocation4 [shape = 'u8[16384]{0}', space=vmem, size = 0x4000, scoped, tag = 'input window, operand 2, single buffered']
    #allocation5 [shape = 's32[1]{0}', space=sflag, size = 0x4, scoped, tag = 'scoped memory for tpu_custom_call.1']
    %15 = vsyncpa [#allocation5], 0
    // Predicated region
    $region2: #{tpu_custom_call.1} parent=1 // pred_check
      _
    $region3: #{tpu_custom_call.1} parent=1 // pred_check_branch
      %17 = sbr.rel (0) target = $region5
    $region4: #{tpu_custom_call.1} parent=1 // pred_region
      _
    $region5: #{tpu_custom_call.1} parent=1 // pred_fallthru
      _
    // Predicated region
    $region6: #{tpu_custom_call.1} parent=1 // pred_check
      _
    $region7: #{tpu_custom_call.1} parent=1 // pred_check_branch
      %19 = sbr.rel (0) target = $region9
    $region8: #{tpu_custom_call.1} parent=1 // pred_region
      _
    $region9: #{tpu_custom_call.1} parent=1 // pred_fallthru
      _
    // Predicated region
    $region10: #{tpu_custom_call.1} parent=1 // pred_check
      _
    $region11: #{tpu_custom_call.1} parent=1 // pred_check_branch
      %21 = sbr.rel (0) target = $region13
    $region12: #{tpu_custom_call.1} parent=1 // pred_region
      %23 = vsyncadd [#allocation5], 0
      %s24 = sshll.u32 %s2, 4
      %s25 = int_to_ptr.hbm [resolvable:$true] %s24
      %s26 = sshll.u32 [#allocation4], 4
      %s27 = int_to_ptr.vmem [resolvable:$true] %s26
      %32 = dma.hbm_to_vmem [thread:$0]  %s25, 512, %s27, [#allocation5], 128, 128, 8
    $region13: #{tpu_custom_call.1} parent=1 // pred_fallthru
      _
    // Predicated region
    $region14: #{tpu_custom_call.1} parent=1 // pred_check
      _
    $region15: #{tpu_custom_call.1} parent=1 // pred_check_branch
      %34 = sbr.rel (0) target = $region17
    $region16: #{tpu_custom_call.1} parent=1 // pred_region
      _
    $region17: #{tpu_custom_call.1} parent=1 // pred_fallthru
      _
    // Predicated region
    $region18: #{tpu_custom_call.1} parent=1 // pred_check
      _
    $region19: #{tpu_custom_call.1} parent=1 // pred_check_branch
      %36 = sbr.rel (0) target = $region21
    $region20: #{tpu_custom_call.1} parent=1 // pred_region
      _
    $region21: #{tpu_custom_call.1} parent=1 // pred_fallthru
      _
    // Predicated region
    $region22: #{tpu_custom_call.1} parent=1 // pred_check
      _
    $region23: #{tpu_custom_call.1} parent=1 // pred_check_branch
      %38 = sbr.rel (0) target = $region25
    $region24: #{tpu_custom_call.1} parent=1 // pred_region
      _
    $region25: #{tpu_custom_call.1} parent=1 // pred_fallthru
      _
    // Predicated region
    $region26: #{tpu_custom_call.1} parent=1 // pred_check
      _
    $region27: #{tpu_custom_call.1} parent=1 // pred_check_branch
      %40 = sbr.rel (0) target = $region29
    $region28: #{tpu_custom_call.1} parent=1 // pred_region
      _
    $region29: #{tpu_custom_call.1} parent=1 // pred_fallthru
      _
    // Predicated region
    $region30: #{tpu_custom_call.1} parent=1 // pred_check
      _
    $region31: #{tpu_custom_call.1} parent=1 // pred_check_branch
      %42 = sbr.rel (0) target = $region33
    $region32: #{tpu_custom_call.1} parent=1 // pred_region
      _
    $region33: #{tpu_custom_call.1} parent=1 // pred_fallthru
      _
    // Predicated region
    $region34: #{tpu_custom_call.1} parent=1 // pred_check
      _
    $region35: #{tpu_custom_call.1} parent=1 // pred_check_branch
      %44 = sbr.rel (0) target = $region37
    $region36: #{tpu_custom_call.1} parent=1 // pred_region
      %46 = dma.done [#allocation5], 512
    $region37: #{tpu_custom_call.1} parent=1 // pred_fallthru
      _
    %v47 = vld [vmem:[%s0] sm:$0xff]
    %v48 = vld [vmem:[%s0 + $0x8] sm:$0xff]
    %v49 = vld [vmem:[%s0 + $0x10] sm:$0xff]
    %v50 = vld [vmem:[%s0 + $0x18] sm:$0xff]
    %v51 = vld [vmem:[%s0 + $0x20] sm:$0xff]
    %v52 = vld [vmem:[%s0 + $0x28] sm:$0xff]
    %v53 = vld [vmem:[%s0 + $0x30] sm:$0xff]
    %v54 = vld [vmem:[%s0 + $0x38] sm:$0xff]
    %v55 = vld [vmem:[%s1] sm:$0xf]
    %v56 = vld [vmem:[%s3] sm:$0x1]
    %v58 = vperm.slane %v56, 0
    %vm60 = vcmask 31744
    %v62 = vsel %vm60, %v47, 0
    %v65 = vsel %vm60, %v48, 0
    %v68 = vsel %vm60, %v49, 0
    %v71 = vsel %vm60, %v50, 0
    %v74 = vsel %vm60, %v51, 0
    %v77 = vsel %vm60, %v52, 0
    %v80 = vsel %vm60, %v53, 0
    %v83 = vsel %vm60, %v54, 0
    %vm85 = vcmask 1043456
    %v87 = vsel %vm85, %v55, 0
    %89 = vmatpush.msra.mxu0 0.0
    %90 = vmatpush.msra.mxu0 0.0
    %91 = vmatpush.msra.mxu0 0.0
    %92 = vmatpush.msra.mxu0 0.0
    %93 = vmatpush.msra.mxu0 0.0
    %94 = vmatpush.msra.mxu0 0.0
    %95 = vmatpush.msra.mxu0 0.0
    %96 = vmatpush.msra.mxu0 0.0
    %97 = vmatpush.msra.mxu0 0.0
    %98 = vmatpush.msra.mxu0 0.0
    %99 = vmatpush.msra.mxu0 0.0
    %100 = vmatpush.msra.mxu0 0.0
    %101 = vmatpush.msra.mxu0 0.0
    %102 = vmatpush.msra.mxu0 0.0
    %103 = vmatpush.msra.mxu0 0.0
    %104 = vmatpush.msra.mxu0 %v87
    %105 = vmatmul.f32.gmra.mxu0 %v62
    %v106 = vpop.f32.mrf.mxu0
    %v107 = vadd.f32 %v58, %v106
    %108 = vmatmul.f32.gmra.mxu0 %v65
    %v109 = vpop.f32.mrf.mxu0
    %v110 = vadd.f32 %v58, %v109
    %111 = vmatmul.f32.gmra.mxu0 %v68
    %v112 = vpop.f32.mrf.mxu0
    %v113 = vadd.f32 %v58, %v112
    %114 = vmatmul.f32.gmra.mxu0 %v71
    %v115 = vpop.f32.mrf.mxu0
    %v116 = vadd.f32 %v58, %v115
    %117 = vmatmul.f32.gmra.mxu0 %v74
    %v118 = vpop.f32.mrf.mxu0
    %v119 = vadd.f32 %v58, %v118
    %120 = vmatmul.f32.gmra.mxu0 %v77
    %v121 = vpop.f32.mrf.mxu0
    %v122 = vadd.f32 %v58, %v121
    %123 = vmatmul.f32.gmra.mxu0 %v80
    %v124 = vpop.f32.mrf.mxu0
    %v125 = vadd.f32 %v58, %v124
    %126 = vmatmul.f32.gmra.mxu0 %v83
    %v127 = vpop.f32.mrf.mxu0
    %v128 = vadd.f32 %v58, %v127
    %129 = vdwg.mxu0
    %130 = vst [vmem:[#allocation2] sm:$0xff] %v107
    %131 = vst [vmem:[#allocation2 + $0x8] sm:$0xff] %v110
    %132 = vst [vmem:[#allocation2 + $0x10] sm:$0xff] %v113
    %133 = vst [vmem:[#allocation2 + $0x18] sm:$0xff] %v116
    %134 = vst [vmem:[#allocation2 + $0x20] sm:$0xff] %v119
    %135 = vst [vmem:[#allocation2 + $0x28] sm:$0xff] %v122
    %136 = vst [vmem:[#allocation2 + $0x30] sm:$0xff] %v125
    %137 = vst [vmem:[#allocation2 + $0x38] sm:$0xff] %v128
    %v138 = vld [vmem:[#allocation4] sm:$0xff]
    %v139 = vld [vmem:[#allocation4 + $0x8] sm:$0xff]
    %v140 = vld [vmem:[#allocation4 + $0x10] sm:$0xff]
    %v141 = vld [vmem:[#allocation4 + $0x18] sm:$0xff]
    %v142 = vld [vmem:[%s4] sm:$0xff]
    %v143 = vld [vmem:[%s4 + $0x8] sm:$0xff]
    %v144 = vld [vmem:[%s4 + $0x10] sm:$0xff]
    %v145 = vld [vmem:[%s4 + $0x18] sm:$0xff]
    %v146 = vld [vmem:[%s4 + $0x20] sm:$0xff]
    %v147 = vld [vmem:[%s4 + $0x28] sm:$0xff]
    %v148 = vld [vmem:[%s4 + $0x30] sm:$0xff]
    %v149 = vld [vmem:[%s4 + $0x38] sm:$0xff]
    %v150 = vld [vmem:[%s5] sm:$0x1]
    %v151 = vld [vmem:[#allocation2] sm:$0xff]
    %vm152 = vcmask 261120
    %v154 = vsel %vm152, 0.0, 0
    %156 = vmatpush.msra.mxu0 0.0
    %157 = vmatpush.msra.mxu0 0.0
    %158 = vmatpush.msra.mxu0 0.0
    %159 = vmatpush.msra.mxu0 0.0
    %160 = vmatpush.msra.mxu0 0.0
    %161 = vmatpush.msra.mxu0 0.0
    %162 = vmatpush.msra.mxu0 0.0
    %163 = vmatpush.msra.mxu0 0.0
    %164 = vmatpush.msra.mxu0 0.0
    %165 = vmatpush.msra.mxu0 0.0
    %166 = vmatpush.msra.mxu0 0.0
    %167 = vmatpush.msra.mxu0 0.0
    %168 = vmatpush.msra.mxu0 %v141
    %169 = vmatpush.msra.mxu0 %v140
    %170 = vmatpush.msra.mxu0 %v139
    %171 = vmatpush.msra.mxu0 %v138
    %172 = vmatmul.f32.gmra.mxu0 %v154
    %v173 = vpop.f32.mrf.mxu0
    %v174 = vadd.f32 0.0, %v173
    %175 = vdwg.mxu0
    %v176 = vadd.f32 %v151, %v174
    %v177 = vxor.u32 %v176, 2147483648
    %v178 = vmul.f32 %v177, 1.442695
    %v179 = vpow.pop %v178
    %v180 = vadd.f32 %v179, 1.0
    %v181 = vrcp.pop %v180
    %v182 = vmul.f32 %v180, %v181
    %v183 = vsub.f32 1.0, %v182
    %v184 = vmul.f32 %v181, %v183
    %v185 = vadd.f32 %v181, %v184
    %vm186 = vweird.f32 %v180
    %vm187 = vweird.f32 %v181
    %vm188 = vmor %vm186, %vm187
    %v189 = vsel %vm188, %v181, %v185
    %v190 = vand.u32 2147483647, %v180
    %vm191 = vcmp.eq.f32.partialorder %v190, 8.507059e+37
    %v192 = vand.u32 %v180, 2147483648
    %v193 = vor.u32 1.1754944e-38, %v192
    %v194 = vsel %vm191, %v193, %v189
    %v195 = vmul.f32 1.0, %v194
    %v196 = vtanh.pop %v176
    %v197 = vmul.f32 %v195, 0.0
    %199 = vrot.lane.b32.xlu0 %v196, 32
    %v200 = vpop.permute.xlu0 %199
    %v202 = vmul.f32 %v195, %v200
    %204 = vrot.lane.b32.xlu0 %v202, 32
    %v205 = vpop.permute.xlu0 %204
    %v207 = vadd.f32 %v197, %v205
    %v208 = vtanh.pop %v207
    %210 = vrot.lane.b32.xlu0 %v208, 32
    %v211 = vpop.permute.xlu0 %210
    %v213 = vmul.f32 %v195, %v211
    %215 = vrot.lane.b32.xlu0 %v213, 64
    %v216 = vpop.permute.xlu0 %215
    %v218 = vsel %vm152, %v216, 0.0
    %v220 = vperm.slane %v150, 0
    %vm222 = vcmask 523264
    %v224 = vsel %vm222, %v218, 0
    %226 = vmatpush.msra.mxu0 0.0
    %227 = vmatpush.msra.mxu0 0.0
    %228 = vmatpush.msra.mxu0 0.0
    %229 = vmatpush.msra.mxu0 0.0
    %230 = vmatpush.msra.mxu0 0.0
    %231 = vmatpush.msra.mxu0 0.0
    %232 = vmatpush.msra.mxu0 0.0
    %233 = vmatpush.msra.mxu0 0.0
    %234 = vmatpush.msra.mxu0 %v149
    %235 = vmatpush.msra.mxu0 %v148
    %236 = vmatpush.msra.mxu0 %v147
    %237 = vmatpush.msra.mxu0 %v146
    %238 = vmatpush.msra.mxu0 %v145
    %239 = vmatpush.msra.mxu0 %v144
    %240 = vmatpush.msra.mxu0 %v143
    %241 = vmatpush.msra.mxu0 %v142
    %242 = vmatmul.f32.gmra.mxu0 %v224
    %v243 = vpop.f32.mrf.mxu0
    %v244 = vadd.f32 %v220, %v243
    %245 = vdwg.mxu0
    %v246 = vxor.u32 %v244, 2147483648
    %v247 = vmul.f32 %v246, 1.442695
    %v248 = vpow.pop %v247
    %v249 = vadd.f32 %v248, 1.0
    %v250 = vrcp.pop %v249
    %v251 = vmul.f32 %v249, %v250
    %v252 = vsub.f32 1.0, %v251
    %v253 = vmul.f32 %v250, %v252
    %v254 = vadd.f32 %v250, %v253
    %vm255 = vweird.f32 %v249
    %vm256 = vweird.f32 %v250
    %vm257 = vmor %vm255, %vm256
    %v258 = vsel %vm257, %v250, %v254
    %v259 = vand.u32 2147483647, %v249
    %vm260 = vcmp.eq.f32.partialorder %v259, 8.507059e+37
    %v261 = vand.u32 %v249, 2147483648
    %v262 = vor.u32 1.1754944e-38, %v261
    %v263 = vsel %vm260, %v262, %v258
    %v264 = vmul.f32 1.0, %v263
    %v265 = vtanh.pop %v244
    %v266 = vmul.f32 %v264, 0.0
    %268 = vrot.lane.b32.xlu0 %v265, 32
    %v269 = vpop.permute.xlu0 %268
    %v271 = vmul.f32 %v264, %v269
    %273 = vrot.lane.b32.xlu0 %v271, 32
    %v274 = vpop.permute.xlu0 %273
    %v276 = vadd.f32 %v266, %v274
    %v277 = vtanh.pop %v276
    %279 = vrot.lane.b32.xlu0 %v277, 32
    %v280 = vpop.permute.xlu0 %279
    %v282 = vmul.f32 %v264, %v280
    %v283 = vld [vmem:[#allocation2 + $0x8] sm:$0xff]
    %v284 = vsel %vm152, %v216, 0
    %286 = vmatpush.msra.mxu0 0.0
    %287 = vmatpush.msra.mxu0 0.0
    %288 = vmatpush.msra.mxu0 0.0
    %289 = vmatpush.msra.mxu0 0.0
    %290 = vmatpush.msra.mxu0 0.0
    %291 = vmatpush.msra.mxu0 0.0
    %292 = vmatpush.msra.mxu0 0.0
    %293 = vmatpush.msra.mxu0 0.0
    %294 = vmatpush.msra.mxu0 0.0
    %295 = vmatpush.msra.mxu0 0.0
    %296 = vmatpush.msra.mxu0 0.0
    %297 = vmatpush.msra.mxu0 0.0
    %298 = vmatpush.msra.mxu0 %v141
    %299 = vmatpush.msra.mxu0 %v140
    %300 = vmatpush.msra.mxu0 %v139
    %301 = vmatpush.msra.mxu0 %v138
    %302 = vmatmul.f32.gmra.mxu0 %v284
    %v303 = vpop.f32.mrf.mxu0
    %v304 = vadd.f32 0.0, %v303
    %305 = vdwg.mxu0
    %v306 = vadd.f32 %v283, %v304
    %v307 = vxor.u32 %v306, 2147483648
    %v308 = vmul.f32 %v307, 1.442695
    %v309 = vpow.pop %v308
    %v310 = vadd.f32 %v309, 1.0
    %v311 = vrcp.pop %v310
    %v312 = vmul.f32 %v310, %v311
    %v313 = vsub.f32 1.0, %v312
    %v314 = vmul.f32 %v311, %v313
    %v315 = vadd.f32 %v311, %v314
    %vm316 = vweird.f32 %v310
    %vm317 = vweird.f32 %v311
    %vm318 = vmor %vm316, %vm317
    %v319 = vsel %vm318, %v311, %v315
    %v320 = vand.u32 2147483647, %v310
    %vm321 = vcmp.eq.f32.partialorder %v320, 8.507059e+37
    %v322 = vand.u32 %v310, 2147483648
    %v323 = vor.u32 1.1754944e-38, %v322
    %v324 = vsel %vm321, %v323, %v319
    %v325 = vmul.f32 1.0, %v324
    %v326 = vtanh.pop %v306
    %v327 = vmul.f32 %v325, %v207
    %329 = vrot.lane.b32.xlu0 %v326, 32
    %v330 = vpop.permute.xlu0 %329
    %v332 = vmul.f32 %v325, %v330
    %334 = vrot.lane.b32.xlu0 %v332, 32
    %v335 = vpop.permute.xlu0 %334
    %v337 = vadd.f32 %v327, %v335
    %v338 = vtanh.pop %v337
    %340 = vrot.lane.b32.xlu0 %v338, 32
    %v341 = vpop.permute.xlu0 %340
    %v343 = vmul.f32 %v325, %v341
    %345 = vrot.lane.b32.xlu0 %v343, 64
    %v346 = vpop.permute.xlu0 %345
    %349 = vrot.lane.b32.xlu0 %v282, 96
    %v350 = vpop.permute.xlu0 %349
    %v352 = vsel %vm152, %v346, %v350
    %v354 = vsel %vm222, %v352, 0
    %356 = vmatpush.msra.mxu0 0.0
    %357 = vmatpush.msra.mxu0 0.0
    %358 = vmatpush.msra.mxu0 0.0
    %359 = vmatpush.msra.mxu0 0.0
    %360 = vmatpush.msra.mxu0 0.0
    %361 = vmatpush.msra.mxu0 0.0
    %362 = vmatpush.msra.mxu0 0.0
    %363 = vmatpush.msra.mxu0 0.0
    %364 = vmatpush.msra.mxu0 %v149
    %365 = vmatpush.msra.mxu0 %v148
    %366 = vmatpush.msra.mxu0 %v147
    %367 = vmatpush.msra.mxu0 %v146
    %368 = vmatpush.msra.mxu0 %v145
    %369 = vmatpush.msra.mxu0 %v144
    %370 = vmatpush.msra.mxu0 %v143
    %371 = vmatpush.msra.mxu0 %v142
    %372 = vmatmul.f32.gmra.mxu0 %v354
    %v373 = vpop.f32.mrf.mxu0
    %v374 = vadd.f32 %v220, %v373
    %375 = vdwg.mxu0
    %v376 = vxor.u32 %v374, 2147483648
    %v377 = vmul.f32 %v376, 1.442695
    %v378 = vpow.pop %v377
    %v379 = vadd.f32 %v378, 1.0
    %v380 = vrcp.pop %v379
    %v381 = vmul.f32 %v379, %v380
    %v382 = vsub.f32 1.0, %v381
    %v383 = vmul.f32 %v380, %v382
    %v384 = vadd.f32 %v380, %v383
    %vm385 = vweird.f32 %v379
    %vm386 = vweird.f32 %v380
    %vm387 = vmor %vm385, %vm386
    %v388 = vsel %vm387, %v380, %v384
    %v389 = vand.u32 2147483647, %v379
    %vm390 = vcmp.eq.f32.partialorder %v389, 8.507059e+37
    %v391 = vand.u32 %v379, 2147483648
    %v392 = vor.u32 1.1754944e-38, %v391
    %v393 = vsel %vm390, %v392, %v388
    %v394 = vmul.f32 1.0, %v393
    %v395 = vtanh.pop %v374
    %v396 = vmul.f32 %v394, %v276
    %398 = vrot.lane.b32.xlu0 %v395, 32
    %v399 = vpop.permute.xlu0 %398
    %v401 = vmul.f32 %v394, %v399
    %403 = vrot.lane.b32.xlu0 %v401, 32
    %v404 = vpop.permute.xlu0 %403
    %v406 = vadd.f32 %v396, %v404
    %v407 = vtanh.pop %v406
    %409 = vrot.lane.b32.xlu0 %v407, 32
    %v410 = vpop.permute.xlu0 %409
    %v412 = vmul.f32 %v394, %v410
    %v413 = vld [vmem:[#allocation2 + $0x10] sm:$0xff]
    %v414 = vsel %vm152, %v346, 0
    %416 = vmatpush.msra.mxu0 0.0
    %417 = vmatpush.msra.mxu0 0.0
    %418 = vmatpush.msra.mxu0 0.0
    %419 = vmatpush.msra.mxu0 0.0
    %420 = vmatpush.msra.mxu0 0.0
    %421 = vmatpush.msra.mxu0 0.0
    %422 = vmatpush.msra.mxu0 0.0
    %423 = vmatpush.msra.mxu0 0.0
    %424 = vmatpush.msra.mxu0 0.0
    %425 = vmatpush.msra.mxu0 0.0
    %426 = vmatpush.msra.mxu0 0.0
    %427 = vmatpush.msra.mxu0 0.0
    %428 = vmatpush.msra.mxu0 %v141
    %429 = vmatpush.msra.mxu0 %v140
    %430 = vmatpush.msra.mxu0 %v139
    %431 = vmatpush.msra.mxu0 %v138
    %432 = vmatmul.f32.gmra.mxu0 %v414
    %v433 = vpop.f32.mrf.mxu0
    %v434 = vadd.f32 0.0, %v433
    %435 = vdwg.mxu0
    %v436 = vadd.f32 %v413, %v434
    %v437 = vxor.u32 %v436, 2147483648
    %v438 = vmul.f32 %v437, 1.442695
    %v439 = vpow.pop %v438
    %v440 = vadd.f32 %v439, 1.0
    %v441 = vrcp.pop %v440
    %v442 = vmul.f32 %v440, %v441
    %v443 = vsub.f32 1.0, %v442
    %v444 = vmul.f32 %v441, %v443
    %v445 = vadd.f32 %v441, %v444
    %vm446 = vweird.f32 %v440
    %vm447 = vweird.f32 %v441
    %vm448 = vmor %vm446, %vm447
    %v449 = vsel %vm448, %v441, %v445
    %v450 = vand.u32 2147483647, %v440
    %vm451 = vcmp.eq.f32.partialorder %v450, 8.507059e+37
    %v452 = vand.u32 %v440, 2147483648
    %v453 = vor.u32 1.1754944e-38, %v452
    %v454 = vsel %vm451, %v453, %v449
    %v455 = vmul.f32 1.0, %v454
    %v456 = vtanh.pop %v436
    %v457 = vmul.f32 %v455, %v337
    %459 = vrot.lane.b32.xlu0 %v456, 32
    %v460 = vpop.permute.xlu0 %459
    %v462 = vmul.f32 %v455, %v460
    %464 = vrot.lane.b32.xlu0 %v462, 32
    %v465 = vpop.permute.xlu0 %464
    %v467 = vadd.f32 %v457, %v465
    %v468 = vtanh.pop %v467
    %470 = vrot.lane.b32.xlu0 %v468, 32
    %v471 = vpop.permute.xlu0 %470
    %v473 = vmul.f32 %v455, %v471
    %475 = vrot.lane.b32.xlu0 %v473, 64
    %v476 = vpop.permute.xlu0 %475
    %479 = vrot.lane.b32.xlu0 %v412, 96
    %v480 = vpop.permute.xlu0 %479
    %v482 = vsel %vm152, %v476, %v480
    %v484 = vsel %vm222, %v482, 0
    %486 = vmatpush.msra.mxu0 0.0
    %487 = vmatpush.msra.mxu0 0.0
    %488 = vmatpush.msra.mxu0 0.0
    %489 = vmatpush.msra.mxu0 0.0
    %490 = vmatpush.msra.mxu0 0.0
    %491 = vmatpush.msra.mxu0 0.0
    %492 = vmatpush.msra.mxu0 0.0
    %493 = vmatpush.msra.mxu0 0.0
    %494 = vmatpush.msra.mxu0 %v149
    %495 = vmatpush.msra.mxu0 %v148
    %496 = vmatpush.msra.mxu0 %v147
    %497 = vmatpush.msra.mxu0 %v146
    %498 = vmatpush.msra.mxu0 %v145
    %499 = vmatpush.msra.mxu0 %v144
    %500 = vmatpush.msra.mxu0 %v143
    %501 = vmatpush.msra.mxu0 %v142
    %502 = vmatmul.f32.gmra.mxu0 %v484
    %v503 = vpop.f32.mrf.mxu0
    %v504 = vadd.f32 %v220, %v503
    %505 = vdwg.mxu0
    %v506 = vxor.u32 %v504, 2147483648
    %v507 = vmul.f32 %v506, 1.442695
    %v508 = vpow.pop %v507
    %v509 = vadd.f32 %v508, 1.0
    %v510 = vrcp.pop %v509
    %v511 = vmul.f32 %v509, %v510
    %v512 = vsub.f32 1.0, %v511
    %v513 = vmul.f32 %v510, %v512
    %v514 = vadd.f32 %v510, %v513
    %vm515 = vweird.f32 %v509
    %vm516 = vweird.f32 %v510
    %vm517 = vmor %vm515, %vm516
    %v518 = vsel %vm517, %v510, %v514
    %v519 = vand.u32 2147483647, %v509
    %vm520 = vcmp.eq.f32.partialorder %v519, 8.507059e+37
    %v521 = vand.u32 %v509, 2147483648
    %v522 = vor.u32 1.1754944e-38, %v521
    %v523 = vsel %vm520, %v522, %v518
    %v524 = vmul.f32 1.0, %v523
    %v525 = vtanh.pop %v504
    %v526 = vmul.f32 %v524, %v406
    %528 = vrot.lane.b32.xlu0 %v525, 32
    %v529 = vpop.permute.xlu0 %528
    %v531 = vmul.f32 %v524, %v529
    %533 = vrot.lane.b32.xlu0 %v531, 32
    %v534 = vpop.permute.xlu0 %533
    %v536 = vadd.f32 %v526, %v534
    %v537 = vtanh.pop %v536
    %539 = vrot.lane.b32.xlu0 %v537, 32
    %v540 = vpop.permute.xlu0 %539
    %v542 = vmul.f32 %v524, %v540
    %v543 = vld [vmem:[#allocation2 + $0x18] sm:$0xff]
    %v544 = vsel %vm152, %v476, 0
    %546 = vmatpush.msra.mxu0 0.0
    %547 = vmatpush.msra.mxu0 0.0
    %548 = vmatpush.msra.mxu0 0.0
    %549 = vmatpush.msra.mxu0 0.0
    %550 = vmatpush.msra.mxu0 0.0
    %551 = vmatpush.msra.mxu0 0.0
    %552 = vmatpush.msra.mxu0 0.0
    %553 = vmatpush.msra.mxu0 0.0
    %554 = vmatpush.msra.mxu0 0.0
    %555 = vmatpush.msra.mxu0 0.0
    %556 = vmatpush.msra.mxu0 0.0
    %557 = vmatpush.msra.mxu0 0.0
    %558 = vmatpush.msra.mxu0 %v141
    %559 = vmatpush.msra.mxu0 %v140
    %560 = vmatpush.msra.mxu0 %v139
    %561 = vmatpush.msra.mxu0 %v138
    %562 = vmatmul.f32.gmra.mxu0 %v544
    %v563 = vpop.f32.mrf.mxu0
    %v564 = vadd.f32 0.0, %v563
    %565 = vdwg.mxu0
    %v566 = vadd.f32 %v543, %v564
    %v567 = vxor.u32 %v566, 2147483648
    %v568 = vmul.f32 %v567, 1.442695
    %v569 = vpow.pop %v568
    %v570 = vadd.f32 %v569, 1.0
    %v571 = vrcp.pop %v570
    %v572 = vmul.f32 %v570, %v571
    %v573 = vsub.f32 1.0, %v572
    %v574 = vmul.f32 %v571, %v573
    %v575 = vadd.f32 %v571, %v574
    %vm576 = vweird.f32 %v570
    %vm577 = vweird.f32 %v571
    %vm578 = vmor %vm576, %vm577
    %v579 = vsel %vm578, %v571, %v575
    %v580 = vand.u32 2147483647, %v570
    %vm581 = vcmp.eq.f32.partialorder %v580, 8.507059e+37
    %v582 = vand.u32 %v570, 2147483648
    %v583 = vor.u32 1.1754944e-38, %v582
    %v584 = vsel %vm581, %v583, %v579
    %v585 = vmul.f32 1.0, %v584
    %v586 = vtanh.pop %v566
    %v587 = vmul.f32 %v585, %v467
    %589 = vrot.lane.b32.xlu0 %v586, 32
    %v590 = vpop.permute.xlu0 %589
    %v592 = vmul.f32 %v585, %v590
    %594 = vrot.lane.b32.xlu0 %v592, 32
    %v595 = vpop.permute.xlu0 %594
    %v597 = vadd.f32 %v587, %v595
    %v598 = vtanh.pop %v597
    %600 = vrot.lane.b32.xlu0 %v598, 32
    %v601 = vpop.permute.xlu0 %600
    %v603 = vmul.f32 %v585, %v601
    %605 = vrot.lane.b32.xlu0 %v603, 64
    %v606 = vpop.permute.xlu0 %605
    %609 = vrot.lane.b32.xlu0 %v542, 96
    %v610 = vpop.permute.xlu0 %609
    %v612 = vsel %vm152, %v606, %v610
    %v614 = vsel %vm222, %v612, 0
    %616 = vmatpush.msra.mxu0 0.0
    %617 = vmatpush.msra.mxu0 0.0
    %618 = vmatpush.msra.mxu0 0.0
    %619 = vmatpush.msra.mxu0 0.0
    %620 = vmatpush.msra.mxu0 0.0
    %621 = vmatpush.msra.mxu0 0.0
    %622 = vmatpush.msra.mxu0 0.0
    %623 = vmatpush.msra.mxu0 0.0
    %624 = vmatpush.msra.mxu0 %v149
    %625 = vmatpush.msra.mxu0 %v148
    %626 = vmatpush.msra.mxu0 %v147
    %627 = vmatpush.msra.mxu0 %v146
    %628 = vmatpush.msra.mxu0 %v145
    %629 = vmatpush.msra.mxu0 %v144
    %630 = vmatpush.msra.mxu0 %v143
    %631 = vmatpush.msra.mxu0 %v142
    %632 = vmatmul.f32.gmra.mxu0 %v614
    %v633 = vpop.f32.mrf.mxu0
    %v634 = vadd.f32 %v220, %v633
    %635 = vdwg.mxu0
    %v636 = vxor.u32 %v634, 2147483648
    %v637 = vmul.f32 %v636, 1.442695
    %v638 = vpow.pop %v637
    %v639 = vadd.f32 %v638, 1.0
    %v640 = vrcp.pop %v639
    %v641 = vmul.f32 %v639, %v640
    %v642 = vsub.f32 1.0, %v641
    %v643 = vmul.f32 %v640, %v642
    %v644 = vadd.f32 %v640, %v643
    %vm645 = vweird.f32 %v639
    %vm646 = vweird.f32 %v640
    %vm647 = vmor %vm645, %vm646
    %v648 = vsel %vm647, %v640, %v644
    %v649 = vand.u32 2147483647, %v639
    %vm650 = vcmp.eq.f32.partialorder %v649, 8.507059e+37
    %v651 = vand.u32 %v639, 2147483648
    %v652 = vor.u32 1.1754944e-38, %v651
    %v653 = vsel %vm650, %v652, %v648
    %v654 = vmul.f32 1.0, %v653
    %v655 = vtanh.pop %v634
    %v656 = vmul.f32 %v654, %v536
    %658 = vrot.lane.b32.xlu0 %v655, 32
    %v659 = vpop.permute.xlu0 %658
    %v661 = vmul.f32 %v654, %v659
    %663 = vrot.lane.b32.xlu0 %v661, 32
    %v664 = vpop.permute.xlu0 %663
    %v666 = vadd.f32 %v656, %v664
    %v667 = vtanh.pop %v666
    %669 = vrot.lane.b32.xlu0 %v667, 32
    %v670 = vpop.permute.xlu0 %669
    %v672 = vmul.f32 %v654, %v670
    %v673 = vld [vmem:[#allocation2 + $0x20] sm:$0xff]
    %v674 = vsel %vm152, %v606, 0
    %676 = vmatpush.msra.mxu0 0.0
    %677 = vmatpush.msra.mxu0 0.0
    %678 = vmatpush.msra.mxu0 0.0
    %679 = vmatpush.msra.mxu0 0.0
    %680 = vmatpush.msra.mxu0 0.0
    %681 = vmatpush.msra.mxu0 0.0
    %682 = vmatpush.msra.mxu0 0.0
    %683 = vmatpush.msra.mxu0 0.0
    %684 = vmatpush.msra.mxu0 0.0
    %685 = vmatpush.msra.mxu0 0.0
    %686 = vmatpush.msra.mxu0 0.0
    %687 = vmatpush.msra.mxu0 0.0
    %688 = vmatpush.msra.mxu0 %v141
    %689 = vmatpush.msra.mxu0 %v140
    %690 = vmatpush.msra.mxu0 %v139
    %691 = vmatpush.msra.mxu0 %v138
    %692 = vmatmul.f32.gmra.mxu0 %v674
    %v693 = vpop.f32.mrf.mxu0
    %v694 = vadd.f32 0.0, %v693
    %695 = vdwg.mxu0
    %v696 = vadd.f32 %v673, %v694
    %v697 = vxor.u32 %v696, 2147483648
    %v698 = vmul.f32 %v697, 1.442695
    %v699 = vpow.pop %v698
    %v700 = vadd.f32 %v699, 1.0
    %v701 = vrcp.pop %v700
    %v702 = vmul.f32 %v700, %v701
    %v703 = vsub.f32 1.0, %v702
    %v704 = vmul.f32 %v701, %v703
    %v705 = vadd.f32 %v701, %v704
    %vm706 = vweird.f32 %v700
    %vm707 = vweird.f32 %v701
    %vm708 = vmor %vm706, %vm707
    %v709 = vsel %vm708, %v701, %v705
    %v710 = vand.u32 2147483647, %v700
    %vm711 = vcmp.eq.f32.partialorder %v710, 8.507059e+37
    %v712 = vand.u32 %v700, 2147483648
    %v713 = vor.u32 1.1754944e-38, %v712
    %v714 = vsel %vm711, %v713, %v709
    %v715 = vmul.f32 1.0, %v714
    %v716 = vtanh.pop %v696
    %v717 = vmul.f32 %v715, %v597
    %719 = vrot.lane.b32.xlu0 %v716, 32
    %v720 = vpop.permute.xlu0 %719
    %v722 = vmul.f32 %v715, %v720
    %724 = vrot.lane.b32.xlu0 %v722, 32
    %v725 = vpop.permute.xlu0 %724
    %v727 = vadd.f32 %v717, %v725
    %v728 = vtanh.pop %v727
    %730 = vrot.lane.b32.xlu0 %v728, 32
    %v731 = vpop.permute.xlu0 %730
    %v733 = vmul.f32 %v715, %v731
    %735 = vrot.lane.b32.xlu0 %v733, 64
    %v736 = vpop.permute.xlu0 %735
    %739 = vrot.lane.b32.xlu0 %v672, 96
    %v740 = vpop.permute.xlu0 %739
    %v742 = vsel %vm152, %v736, %v740
    %v744 = vsel %vm222, %v742, 0
    %746 = vmatpush.msra.mxu0 0.0
    %747 = vmatpush.msra.mxu0 0.0
    %748 = vmatpush.msra.mxu0 0.0
    %749 = vmatpush.msra.mxu0 0.0
    %750 = vmatpush.msra.mxu0 0.0
    %751 = vmatpush.msra.mxu0 0.0
    %752 = vmatpush.msra.mxu0 0.0
    %753 = vmatpush.msra.mxu0 0.0
    %754 = vmatpush.msra.mxu0 %v149
    %755 = vmatpush.msra.mxu0 %v148
    %756 = vmatpush.msra.mxu0 %v147
    %757 = vmatpush.msra.mxu0 %v146
    %758 = vmatpush.msra.mxu0 %v145
    %759 = vmatpush.msra.mxu0 %v144
    %760 = vmatpush.msra.mxu0 %v143
    %761 = vmatpush.msra.mxu0 %v142
    %762 = vmatmul.f32.gmra.mxu0 %v744
    %v763 = vpop.f32.mrf.mxu0
    %v764 = vadd.f32 %v220, %v763
    %765 = vdwg.mxu0
    %v766 = vxor.u32 %v764, 2147483648
    %v767 = vmul.f32 %v766, 1.442695
    %v768 = vpow.pop %v767
    %v769 = vadd.f32 %v768, 1.0
    %v770 = vrcp.pop %v769
    %v771 = vmul.f32 %v769, %v770
    %v772 = vsub.f32 1.0, %v771
    %v773 = vmul.f32 %v770, %v772
    %v774 = vadd.f32 %v770, %v773
    %vm775 = vweird.f32 %v769
    %vm776 = vweird.f32 %v770
    %vm777 = vmor %vm775, %vm776
    %v778 = vsel %vm777, %v770, %v774
    %v779 = vand.u32 2147483647, %v769
    %vm780 = vcmp.eq.f32.partialorder %v779, 8.507059e+37
    %v781 = vand.u32 %v769, 2147483648
    %v782 = vor.u32 1.1754944e-38, %v781
    %v783 = vsel %vm780, %v782, %v778
    %v784 = vmul.f32 1.0, %v783
    %v785 = vtanh.pop %v764
    %v786 = vmul.f32 %v784, %v666
    %788 = vrot.lane.b32.xlu0 %v785, 32
    %v789 = vpop.permute.xlu0 %788
    %v791 = vmul.f32 %v784, %v789
    %793 = vrot.lane.b32.xlu0 %v791, 32
    %v794 = vpop.permute.xlu0 %793
    %v796 = vadd.f32 %v786, %v794
    %v797 = vtanh.pop %v796
    %799 = vrot.lane.b32.xlu0 %v797, 32
    %v800 = vpop.permute.xlu0 %799
    %v802 = vmul.f32 %v784, %v800
    %v803 = vld [vmem:[#allocation2 + $0x28] sm:$0xff]
    %v804 = vsel %vm152, %v736, 0
    %806 = vmatpush.msra.mxu0 0.0
    %807 = vmatpush.msra.mxu0 0.0
    %808 = vmatpush.msra.mxu0 0.0
    %809 = vmatpush.msra.mxu0 0.0
    %810 = vmatpush.msra.mxu0 0.0
    %811 = vmatpush.msra.mxu0 0.0
    %812 = vmatpush.msra.mxu0 0.0
    %813 = vmatpush.msra.mxu0 0.0
    %814 = vmatpush.msra.mxu0 0.0
    %815 = vmatpush.msra.mxu0 0.0
    %816 = vmatpush.msra.mxu0 0.0
    %817 = vmatpush.msra.mxu0 0.0
    %818 = vmatpush.msra.mxu0 %v141
    %819 = vmatpush.msra.mxu0 %v140
    %820 = vmatpush.msra.mxu0 %v139
    %821 = vmatpush.msra.mxu0 %v138
    %822 = vmatmul.f32.gmra.mxu0 %v804
    %v823 = vpop.f32.mrf.mxu0
    %v824 = vadd.f32 0.0, %v823
    %825 = vdwg.mxu0
    %v826 = vadd.f32 %v803, %v824
    %v827 = vxor.u32 %v826, 2147483648
    %v828 = vmul.f32 %v827, 1.442695
    %v829 = vpow.pop %v828
    %v830 = vadd.f32 %v829, 1.0
    %v831 = vrcp.pop %v830
    %v832 = vmul.f32 %v830, %v831
    %v833 = vsub.f32 1.0, %v832
    %v834 = vmul.f32 %v831, %v833
    %v835 = vadd.f32 %v831, %v834
    %vm836 = vweird.f32 %v830
    %vm837 = vweird.f32 %v831
    %vm838 = vmor %vm836, %vm837
    %v839 = vsel %vm838, %v831, %v835
    %v840 = vand.u32 2147483647, %v830
    %vm841 = vcmp.eq.f32.partialorder %v840, 8.507059e+37
    %v842 = vand.u32 %v830, 2147483648
    %v843 = vor.u32 1.1754944e-38, %v842
    %v844 = vsel %vm841, %v843, %v839
    %v845 = vmul.f32 1.0, %v844
    %v846 = vtanh.pop %v826
    %v847 = vmul.f32 %v845, %v727
    %849 = vrot.lane.b32.xlu0 %v846, 32
    %v850 = vpop.permute.xlu0 %849
    %v852 = vmul.f32 %v845, %v850
    %854 = vrot.lane.b32.xlu0 %v852, 32
    %v855 = vpop.permute.xlu0 %854
    %v857 = vadd.f32 %v847, %v855
    %v858 = vtanh.pop %v857
    %860 = vrot.lane.b32.xlu0 %v858, 32
    %v861 = vpop.permute.xlu0 %860
    %v863 = vmul.f32 %v845, %v861
    %865 = vrot.lane.b32.xlu0 %v863, 64
    %v866 = vpop.permute.xlu0 %865
    %869 = vrot.lane.b32.xlu0 %v802, 96
    %v870 = vpop.permute.xlu0 %869
    %v872 = vsel %vm152, %v866, %v870
    %v874 = vsel %vm222, %v872, 0
    %876 = vmatpush.msra.mxu0 0.0
    %877 = vmatpush.msra.mxu0 0.0
    %878 = vmatpush.msra.mxu0 0.0
    %879 = vmatpush.msra.mxu0 0.0
    %880 = vmatpush.msra.mxu0 0.0
    %881 = vmatpush.msra.mxu0 0.0
    %882 = vmatpush.msra.mxu0 0.0
    %883 = vmatpush.msra.mxu0 0.0
    %884 = vmatpush.msra.mxu0 %v149
    %885 = vmatpush.msra.mxu0 %v148
    %886 = vmatpush.msra.mxu0 %v147
    %887 = vmatpush.msra.mxu0 %v146
    %888 = vmatpush.msra.mxu0 %v145
    %889 = vmatpush.msra.mxu0 %v144
    %890 = vmatpush.msra.mxu0 %v143
    %891 = vmatpush.msra.mxu0 %v142
    %892 = vmatmul.f32.gmra.mxu0 %v874
    %v893 = vpop.f32.mrf.mxu0
    %v894 = vadd.f32 %v220, %v893
    %895 = vdwg.mxu0
    %v896 = vxor.u32 %v894, 2147483648
    %v897 = vmul.f32 %v896, 1.442695
    %v898 = vpow.pop %v897
    %v899 = vadd.f32 %v898, 1.0
    %v900 = vrcp.pop %v899
    %v901 = vmul.f32 %v899, %v900
    %v902 = vsub.f32 1.0, %v901
    %v903 = vmul.f32 %v900, %v902
    %v904 = vadd.f32 %v900, %v903
    %vm905 = vweird.f32 %v899
    %vm906 = vweird.f32 %v900
    %vm907 = vmor %vm905, %vm906
    %v908 = vsel %vm907, %v900, %v904
    %v909 = vand.u32 2147483647, %v899
    %vm910 = vcmp.eq.f32.partialorder %v909, 8.507059e+37
    %v911 = vand.u32 %v899, 2147483648
    %v912 = vor.u32 1.1754944e-38, %v911
    %v913 = vsel %vm910, %v912, %v908
    %v914 = vmul.f32 1.0, %v913
    %v915 = vtanh.pop %v894
    %v916 = vmul.f32 %v914, %v796
    %918 = vrot.lane.b32.xlu0 %v915, 32
    %v919 = vpop.permute.xlu0 %918
    %v921 = vmul.f32 %v914, %v919
    %923 = vrot.lane.b32.xlu0 %v921, 32
    %v924 = vpop.permute.xlu0 %923
    %v926 = vadd.f32 %v916, %v924
    %v927 = vtanh.pop %v926
    %929 = vrot.lane.b32.xlu0 %v927, 32
    %v930 = vpop.permute.xlu0 %929
    %v932 = vmul.f32 %v914, %v930
    %v933 = vld [vmem:[#allocation2 + $0x30] sm:$0xff]
    %v934 = vsel %vm152, %v866, 0
    %936 = vmatpush.msra.mxu0 0.0
    %937 = vmatpush.msra.mxu0 0.0
    %938 = vmatpush.msra.mxu0 0.0
    %939 = vmatpush.msra.mxu0 0.0
    %940 = vmatpush.msra.mxu0 0.0
    %941 = vmatpush.msra.mxu0 0.0
    %942 = vmatpush.msra.mxu0 0.0
    %943 = vmatpush.msra.mxu0 0.0
    %944 = vmatpush.msra.mxu0 0.0
    %945 = vmatpush.msra.mxu0 0.0
    %946 = vmatpush.msra.mxu0 0.0
    %947 = vmatpush.msra.mxu0 0.0
    %948 = vmatpush.msra.mxu0 %v141
    %949 = vmatpush.msra.mxu0 %v140
    %950 = vmatpush.msra.mxu0 %v139
    %951 = vmatpush.msra.mxu0 %v138
    %952 = vmatmul.f32.gmra.mxu0 %v934
    %v953 = vpop.f32.mrf.mxu0
    %v954 = vadd.f32 0.0, %v953
    %955 = vdwg.mxu0
    %v956 = vadd.f32 %v933, %v954
    %v957 = vxor.u32 %v956, 2147483648
    %v958 = vmul.f32 %v957, 1.442695
    %v959 = vpow.pop %v958
    %v960 = vadd.f32 %v959, 1.0
    %v961 = vrcp.pop %v960
    %v962 = vmul.f32 %v960, %v961
    %v963 = vsub.f32 1.0, %v962
    %v964 = vmul.f32 %v961, %v963
    %v965 = vadd.f32 %v961, %v964
    %vm966 = vweird.f32 %v960
    %vm967 = vweird.f32 %v961
    %vm968 = vmor %vm966, %vm967
    %v969 = vsel %vm968, %v961, %v965
    %v970 = vand.u32 2147483647, %v960
    %vm971 = vcmp.eq.f32.partialorder %v970, 8.507059e+37
    %v972 = vand.u32 %v960, 2147483648
    %v973 = vor.u32 1.1754944e-38, %v972
    %v974 = vsel %vm971, %v973, %v969
    %v975 = vmul.f32 1.0, %v974
    %v976 = vtanh.pop %v956
    %v977 = vmul.f32 %v975, %v857
    %979 = vrot.lane.b32.xlu0 %v976, 32
    %v980 = vpop.permute.xlu0 %979
    %v982 = vmul.f32 %v975, %v980
    %984 = vrot.lane.b32.xlu0 %v982, 32
    %v985 = vpop.permute.xlu0 %984
    %v987 = vadd.f32 %v977, %v985
    %v988 = vtanh.pop %v987
    %990 = vrot.lane.b32.xlu0 %v988, 32
    %v991 = vpop.permute.xlu0 %990
    %v993 = vmul.f32 %v975, %v991
    %995 = vrot.lane.b32.xlu0 %v993, 64
    %v996 = vpop.permute.xlu0 %995
    %999 = vrot.lane.b32.xlu0 %v932, 96
    %v1000 = vpop.permute.xlu0 %999
    %v1002 = vsel %vm152, %v996, %v1000
    %v1004 = vsel %vm222, %v1002, 0
    %1006 = vmatpush.msra.mxu0 0.0
    %1007 = vmatpush.msra.mxu0 0.0
    %1008 = vmatpush.msra.mxu0 0.0
    %1009 = vmatpush.msra.mxu0 0.0
    %1010 = vmatpush.msra.mxu0 0.0
    %1011 = vmatpush.msra.mxu0 0.0
    %1012 = vmatpush.msra.mxu0 0.0
    %1013 = vmatpush.msra.mxu0 0.0
    %1014 = vmatpush.msra.mxu0 %v149
    %1015 = vmatpush.msra.mxu0 %v148
    %1016 = vmatpush.msra.mxu0 %v147
    %1017 = vmatpush.msra.mxu0 %v146
    %1018 = vmatpush.msra.mxu0 %v145
    %1019 = vmatpush.msra.mxu0 %v144
    %1020 = vmatpush.msra.mxu0 %v143
    %1021 = vmatpush.msra.mxu0 %v142
    %1022 = vmatmul.f32.gmra.mxu0 %v1004
    %v1023 = vpop.f32.mrf.mxu0
    %v1024 = vadd.f32 %v220, %v1023
    %1025 = vdwg.mxu0
    %v1026 = vxor.u32 %v1024, 2147483648
    %v1027 = vmul.f32 %v1026, 1.442695
    %v1028 = vpow.pop %v1027
    %v1029 = vadd.f32 %v1028, 1.0
    %v1030 = vrcp.pop %v1029
    %v1031 = vmul.f32 %v1029, %v1030
    %v1032 = vsub.f32 1.0, %v1031
    %v1033 = vmul.f32 %v1030, %v1032
    %v1034 = vadd.f32 %v1030, %v1033
    %vm1035 = vweird.f32 %v1029
    %vm1036 = vweird.f32 %v1030
    %vm1037 = vmor %vm1035, %vm1036
    %v1038 = vsel %vm1037, %v1030, %v1034
    %v1039 = vand.u32 2147483647, %v1029
    %vm1040 = vcmp.eq.f32.partialorder %v1039, 8.507059e+37
    %v1041 = vand.u32 %v1029, 2147483648
    %v1042 = vor.u32 1.1754944e-38, %v1041
    %v1043 = vsel %vm1040, %v1042, %v1038
    %v1044 = vmul.f32 1.0, %v1043
    %v1045 = vtanh.pop %v1024
    %v1046 = vmul.f32 %v1044, %v926
    %1048 = vrot.lane.b32.xlu0 %v1045, 32
    %v1049 = vpop.permute.xlu0 %1048
    %v1051 = vmul.f32 %v1044, %v1049
    %1053 = vrot.lane.b32.xlu0 %v1051, 32
    %v1054 = vpop.permute.xlu0 %1053
    %v1056 = vadd.f32 %v1046, %v1054
    %v1057 = vtanh.pop %v1056
    %1059 = vrot.lane.b32.xlu0 %v1057, 32
    %v1060 = vpop.permute.xlu0 %1059
    %v1062 = vmul.f32 %v1044, %v1060
    %v1063 = vld [vmem:[#allocation2 + $0x38] sm:$0xff]
    %v1064 = vsel %vm152, %v996, 0
    %1066 = vmatpush.msra.mxu0 0.0
    %1067 = vmatpush.msra.mxu0 0.0
    %1068 = vmatpush.msra.mxu0 0.0
    %1069 = vmatpush.msra.mxu0 0.0
    %1070 = vmatpush.msra.mxu0 0.0
    %1071 = vmatpush.msra.mxu0 0.0
    %1072 = vmatpush.msra.mxu0 0.0
    %1073 = vmatpush.msra.mxu0 0.0
    %1074 = vmatpush.msra.mxu0 0.0
    %1075 = vmatpush.msra.mxu0 0.0
    %1076 = vmatpush.msra.mxu0 0.0
    %1077 = vmatpush.msra.mxu0 0.0
    %1078 = vmatpush.msra.mxu0 %v141
    %1079 = vmatpush.msra.mxu0 %v140
    %1080 = vmatpush.msra.mxu0 %v139
    %1081 = vmatpush.msra.mxu0 %v138
    %1082 = vmatmul.f32.gmra.mxu0 %v1064
    %v1083 = vpop.f32.mrf.mxu0
    %v1084 = vadd.f32 0.0, %v1083
    %1085 = vdwg.mxu0
    %v1086 = vadd.f32 %v1063, %v1084
    %v1087 = vxor.u32 %v1086, 2147483648
    %v1088 = vmul.f32 %v1087, 1.442695
    %v1089 = vpow.pop %v1088
    %v1090 = vadd.f32 %v1089, 1.0
    %v1091 = vrcp.pop %v1090
    %v1092 = vmul.f32 %v1090, %v1091
    %v1093 = vsub.f32 1.0, %v1092
    %v1094 = vmul.f32 %v1091, %v1093
    %v1095 = vadd.f32 %v1091, %v1094
    %vm1096 = vweird.f32 %v1090
    %vm1097 = vweird.f32 %v1091
    %vm1098 = vmor %vm1096, %vm1097
    %v1099 = vsel %vm1098, %v1091, %v1095
    %v1100 = vand.u32 2147483647, %v1090
    %vm1101 = vcmp.eq.f32.partialorder %v1100, 8.507059e+37
    %v1102 = vand.u32 %v1090, 2147483648
    %v1103 = vor.u32 1.1754944e-38, %v1102
    %v1104 = vsel %vm1101, %v1103, %v1099
    %v1105 = vmul.f32 1.0, %v1104
    %v1106 = vtanh.pop %v1086
    %v1107 = vmul.f32 %v1105, %v987
    %1109 = vrot.lane.b32.xlu0 %v1106, 32
    %v1110 = vpop.permute.xlu0 %1109
    %v1112 = vmul.f32 %v1105, %v1110
    %1114 = vrot.lane.b32.xlu0 %v1112, 32
    %v1115 = vpop.permute.xlu0 %1114
    %v1117 = vadd.f32 %v1107, %v1115
    %v1118 = vtanh.pop %v1117
    %1120 = vrot.lane.b32.xlu0 %v1118, 32
    %v1121 = vpop.permute.xlu0 %1120
    %v1123 = vmul.f32 %v1105, %v1121
    %1125 = vrot.lane.b32.xlu0 %v1123, 64
    %v1126 = vpop.permute.xlu0 %1125
    %1129 = vrot.lane.b32.xlu0 %v1062, 96
    %v1130 = vpop.permute.xlu0 %1129
    %v1132 = vsel %vm152, %v1126, %v1130
    %v1134 = vsel %vm222, %v1132, 0
    %1136 = vmatpush.msra.mxu0 0.0
    %1137 = vmatpush.msra.mxu0 0.0
    %1138 = vmatpush.msra.mxu0 0.0
    %1139 = vmatpush.msra.mxu0 0.0
    %1140 = vmatpush.msra.mxu0 0.0
    %1141 = vmatpush.msra.mxu0 0.0
    %1142 = vmatpush.msra.mxu0 0.0
    %1143 = vmatpush.msra.mxu0 0.0
    %1144 = vmatpush.msra.mxu0 %v149
    %1145 = vmatpush.msra.mxu0 %v148
    %1146 = vmatpush.msra.mxu0 %v147
    %1147 = vmatpush.msra.mxu0 %v146
    %1148 = vmatpush.msra.mxu0 %v145
    %1149 = vmatpush.msra.mxu0 %v144
    %1150 = vmatpush.msra.mxu0 %v143
    %1151 = vmatpush.msra.mxu0 %v142
    %1152 = vmatmul.f32.gmra.mxu0 %v1134
    %v1153 = vpop.f32.mrf.mxu0
    %v1154 = vadd.f32 %v220, %v1153
    %1155 = vdwg.mxu0
    %v1156 = vxor.u32 %v1154, 2147483648
    %v1157 = vmul.f32 %v1156, 1.442695
    %v1158 = vpow.pop %v1157
    %v1159 = vadd.f32 %v1158, 1.0
    %v1160 = vrcp.pop %v1159
    %v1161 = vmul.f32 %v1159, %v1160
    %v1162 = vsub.f32 1.0, %v1161
    %v1163 = vmul.f32 %v1160, %v1162
    %v1164 = vadd.f32 %v1160, %v1163
    %vm1165 = vweird.f32 %v1159
    %vm1166 = vweird.f32 %v1160
    %vm1167 = vmor %vm1165, %vm1166
    %v1168 = vsel %vm1167, %v1160, %v1164
    %v1169 = vand.u32 2147483647, %v1159
    %vm1170 = vcmp.eq.f32.partialorder %v1169, 8.507059e+37
    %v1171 = vand.u32 %v1159, 2147483648
    %v1172 = vor.u32 1.1754944e-38, %v1171
    %v1173 = vsel %vm1170, %v1172, %v1168
    %v1174 = vmul.f32 1.0, %v1173
    %v1175 = vtanh.pop %v1154
    %v1176 = vmul.f32 %v1174, %v1056
    %1178 = vrot.lane.b32.xlu0 %v1175, 32
    %v1179 = vpop.permute.xlu0 %1178
    %v1181 = vmul.f32 %v1174, %v1179
    %1183 = vrot.lane.b32.xlu0 %v1181, 32
    %v1184 = vpop.permute.xlu0 %1183
    %v1186 = vadd.f32 %v1176, %v1184
    %v1187 = vtanh.pop %v1186
    %1189 = vrot.lane.b32.xlu0 %v1187, 32
    %v1190 = vpop.permute.xlu0 %1189
    %v1192 = vmul.f32 %v1174, %v1190
    %v1193 = vld [vmem:[%s6] sm:$0x1]
    %v1195 = vperm.slane %v1193, 0
    %1196 = vrot.lane.b32.xlu0 %v1195, 64
    %v1197 = vpop.permute.xlu0 %1196
    %v1199 = vmul.f32 %v1192, %v1197
    %1201 = vrot.lane.b32.xlu0 %v1199, 64
    %v1202 = vpop.permute.xlu0 %1201
    %v1204 = vsel %vm152, %v1202, 0.0
    %1205 = vadd.xlane.f32.xlu0 %v1204
    %v1206 = vpop.xlane.xlu0 %1205
    %v1207 = vld [vmem:[#allocation3] sm:$0x1]
    %v1209 = vperm.slane %v1207, 0
    %v1211 = vadd.f32 %v1206, %v1209
    %vm1212 = vcmask 7168
    %1213 = vst.msk [vmem:[%s8] sm:$0xff] %vm1212, %v1211
    // Predicated region
    $region38: #{tpu_custom_call.1} parent=1 // pred_check
      _
    $region39: #{tpu_custom_call.1} parent=1 // pred_check_branch
      %1215 = sbr.rel (0) target = $region41
    $region40: #{tpu_custom_call.1} parent=1 // pred_region
      _
    $region41: #{tpu_custom_call.1} parent=1 // pred_fallthru
      _
    // Predicated region
    $region42: #{tpu_custom_call.1} parent=1 // pred_check
      _
    $region43: #{tpu_custom_call.1} parent=1 // pred_check_branch
      %1217 = sbr.rel (0) target = $region45
    $region44: #{tpu_custom_call.1} parent=1 // pred_region
      _
    $region45: #{tpu_custom_call.1} parent=1 // pred_fallthru
      _
    %1218 = vsyncpa [#allocation5], 1

</llo_original>
